<compile_context>
chip_gen: v5e
topology: v5e:2x2
jax: 0.10.0
libtpu: 0.0.40
codegen_flags: <defaults>
</compile_context>

<pallas_src>
import functools

import jax
import jax.numpy as jnp
from jax import lax
from jax.experimental import pallas as pl
from jax.experimental.pallas import tpu as pltpu


def _round_up(x, m):
    return ((x + m - 1) // m) * m


def _rnn_fused_kernel(p0_ref, wih_ref, whh_ref, b_ref, o_ref, h_ref, *,
                      num_layers, t_blk):
    """Fused multi-layer tanh RNN recurrence over one block of t_blk time steps.

    p0_ref : (T_BLK, Bp, Hp)   hoisted layer-0 projection x@W_ih^T + b (padded)
    wih_ref: (max(L-1,1), Hp, Hp)  W_ih^T for layers 1..L-1 (resident in VMEM)
    whh_ref: (L, Hp, Hp)           W_hh^T for every layer  (resident in VMEM)
    b_ref  : (max(L-1,1), 1, Hp)   b_ih + b_hh for layers 1..L-1
    o_ref  : (T_BLK, Bp, Hp)       last-layer hidden states for this block
    h_ref  : (L, Bp, Hp) fp32 VMEM scratch -- hidden carry per layer
    """
    @pl.when(pl.program_id(0) == 0)
    def _():
        # hidden_0 = zeros for every layer (matches Variable(torch.zeros(...)))
        h_ref[...] = jnp.zeros_like(h_ref)

    def step(t, carry):
        # Layer 0: input projection already hoisted -> tanh(P_t + h @ W_hh^T).
        h = jnp.tanh(
            p0_ref[t]
            + jnp.dot(h_ref[0], whh_ref[0], preferred_element_type=jnp.float32)
        )
        h_ref[0] = h
        # Layers 1..L-1, statically unrolled; weights stay resident in VMEM.
        for l in range(1, num_layers):
            h = jnp.tanh(
                jnp.dot(h, wih_ref[l - 1], preferred_element_type=jnp.float32)
                + b_ref[l - 1]  # (1, Hp) broadcasts over batch
                + jnp.dot(h_ref[l], whh_ref[l], preferred_element_type=jnp.float32)
            )
            h_ref[l] = h
        # Only the last layer's hidden state is the module output.
        o_ref[t] = h.astype(o_ref.dtype)
        return carry

    lax.fori_loop(0, t_blk, step, 0, unroll=True)


def prepare_rnn_params(params):
    """One-time weight prep (transpose, pad to lane-dense shapes, stack, pre-add biases).

    params: list of (w_ih (H, D_in), w_hh (H, H), b_ih (H,), b_hh (H,)) per layer,
            in PyTorch nn.RNN layout.
    """
    num_layers = len(params)
    hidden = params[0][0].shape[0]
    d_in = params[0][0].shape[1]
    h_pad = _round_up(hidden, 128)   # lane-dense hidden dim (MXU/vreg aligned)

    w_ih0, _, b_ih0, b_hh0 = params[0]
    wih0_t = jnp.zeros((d_in, h_pad), jnp.float32).at[:, :hidden].set(
        w_ih0.T.astype(jnp.float32))
    bias0 = jnp.zeros((h_pad,), jnp.float32).at[:hidden].set(
        (b_ih0 + b_hh0).astype(jnp.float32))

    def pad_t(w):  # (H, H) -> transposed, zero-padded (Hp, Hp)
        return jnp.zeros((h_pad, h_pad), jnp.float32).at[:hidden, :hidden].set(
            w.T.astype(jnp.float32))

    # NOTE: for large H, cast these stacks to bf16 (keep preferred_element_type
    # fp32 and the hidden carry fp32) to halve VMEM residency and weight DMA.
    # Kept fp32 here for exact parity with the fp32 reference at tiny sizes.
    whh = jnp.stack([pad_t(params[l][1]) for l in range(num_layers)])  # (L, Hp, Hp)
    if num_layers > 1:
        wih_rest = jnp.stack([pad_t(params[l][0]) for l in range(1, num_layers)])
        b_rest = jnp.stack([
            jnp.zeros((1, h_pad), jnp.float32).at[0, :hidden].set(
                (params[l][2] + params[l][3]).astype(jnp.float32))
            for l in range(1, num_layers)
        ])
    else:  # dummies (never read inside the kernel when num_layers == 1)
        wih_rest = jnp.zeros((1, h_pad, h_pad), jnp.float32)
        b_rest = jnp.zeros((1, 1, h_pad), jnp.float32)

    return (wih0_t, bias0, wih_rest, whh, b_rest)


@functools.partial(jax.jit, static_argnames=("hidden_size", "t_blk"))
def rnn_forward(x_bf, prepared, *, hidden_size, t_blk=8):
    """Forward matching RNN.forward: x (B, S, D) batch_first -> output (B, S, H)."""
    wih0_t, bias0, wih_rest, whh, b_rest = prepared
    batch, seq, d_in = x_bf.shape
    num_layers, h_pad, _ = whh.shape
    n_rest = wih_rest.shape[0]

    b_pad = _round_up(batch, 8)       # fp32 sublane multiple
    s_pad = _round_up(seq, t_blk)     # whole number of time blocks

    # batch_first -> time-major; zero-pad seq & batch to tile-friendly sizes.
    x_tm = jnp.transpose(x_bf, (1, 0, 2)).astype(jnp.float32)         # (S, B, D)
    x_tm = jnp.pad(x_tm, ((0, s_pad - seq), (0, b_pad - batch), (0, 0)))

    # Hoisted layer-0 input projection: ONE big (S*B, D) x (D, Hp) MXU matmul,
    # bias pre-added.  No sequential dependency, so it stays out of the kernel.
    p0 = jnp.dot(x_tm.reshape(s_pad * b_pad, d_in), wih0_t,
                 preferred_element_type=jnp.float32,
                 precision=jax.lax.Precision.HIGHEST) + bias0
    p0 = p0.reshape(s_pad, b_pad, h_pad)

    kernel = functools.partial(_rnn_fused_kernel,
                               num_layers=num_layers, t_blk=t_blk)

    out = pl.pallas_call(
        kernel,
        out_shape=jax.ShapeDtypeStruct((s_pad, b_pad, h_pad), jnp.float32),
        grid_spec=pltpu.PrefetchScalarGridSpec(
            num_scalar_prefetch=0,
            grid=(s_pad // t_blk,),
            in_specs=[
                pl.BlockSpec((t_blk, b_pad, h_pad), lambda i: (i, 0, 0)),   # P0 block
                pl.BlockSpec((n_rest, h_pad, h_pad), lambda i: (0, 0, 0)),  # W_ih^T l>=1 (resident)
                pl.BlockSpec((num_layers, h_pad, h_pad), lambda i: (0, 0, 0)),  # W_hh^T (resident)
                pl.BlockSpec((n_rest, 1, h_pad), lambda i: (0, 0, 0)),      # biases l>=1 (resident)
            ],
            out_specs=pl.BlockSpec((t_blk, b_pad, h_pad), lambda i: (i, 0, 0)),
            scratch_shapes=[pltpu.VMEM((num_layers, b_pad, h_pad), jnp.float32)],
        ),
        compiler_params=pltpu.CompilerParams(
            dimension_semantics=("arbitrary",),   # time blocks are sequential
        ),
    )(p0, wih_rest, whh, b_rest)

    # Strip padding, back to batch_first.
    out = out[:seq, :batch, :hidden_size]
    return jnp.transpose(out, (1, 0, 2))          # (B, S, H)


def init_rnn_params(key, input_size, hidden_size, num_layers):
    """PyTorch-style uniform(-1/sqrt(H), 1/sqrt(H)) init, PyTorch weight layout."""
    params = []
    bound = 1.0 / jnp.sqrt(jnp.float32(hidden_size))
    for layer in range(num_layers):
        d_in = input_size if layer == 0 else hidden_size
        key, k1, k2, k3, k4 = jax.random.split(key, 5)
        w_ih = jax.random.uniform(k1, (hidden_size, d_in), jnp.float32, -bound, bound)
        w_hh = jax.random.uniform(k2, (hidden_size, hidden_size), jnp.float32, -bound, bound)
        b_ih = jax.random.uniform(k3, (hidden_size,), jnp.float32, -bound, bound)
        b_hh = jax.random.uniform(k4, (hidden_size,), jnp.float32, -bound, bound)
        params.append((w_ih, w_hh, b_ih, b_hh))
    return params


def _reference_rnn(x_bf, params):
    """Pure-JAX reference of the same recurrence (sanity check)."""
    h_seq = jnp.transpose(x_bf, (1, 0, 2)).astype(jnp.float32)   # (S, B, D)
    for (w_ih, w_hh, b_ih, b_hh) in params:
        batch = h_seq.shape[1]
        hidden = w_ih.shape[0]
        h = jnp.zeros((batch, hidden), jnp.float32)
        outs = []
        for t in range(h_seq.shape[0]):
            h = jnp.tanh(h_seq[t] @ w_ih.T + b_ih + h @ w_hh.T + b_hh)
            outs.append(h)
        h_seq = jnp.stack(outs, axis=0)
    return jnp.transpose(h_seq, (1, 0, 2))


# TODO(synk): bidirectional / relu-nonlinearity nn.RNN variants not implemented
#             (the module is constructed with the defaults: tanh, unidirectional,
#              dropout=0, batch_first=True).

if __name__ == "__main__":
    batch = 2
    seq_len = 8
    input_size = 16
    hidden_size = 32
    num_layers = 2

    key = jax.random.PRNGKey(0)
    kx, kp = jax.random.split(key)
    x = jax.random.normal(kx, (batch, seq_len, input_size), jnp.float32)

    params = init_rnn_params(kp, input_size, hidden_size, num_layers)
    prepared = prepare_rnn_params(params)      # one-time transpose/pad/stack

    out = rnn_forward(x, prepared, hidden_size=hidden_size, t_blk=8)
    out = jax.block_until_ready(out)

    assert out.shape == (batch, seq_len, hidden_size), out.shape

    ref = _reference_rnn(x, params)
    assert jnp.allclose(out, ref, atol=1e-4, rtol=1e-4), "mismatch vs reference"

    print("KERNEL_OK")
</pallas_src>

<mosaic_0001>
module attributes {stable_mosaic.version = 11 : i64} {
  func.func @_rnn_fused_kernel(%arg0: i32, %arg1: memref<8x8x128xf32, #tpu.memory_space<vmem>>, %arg2: memref<1x128x128xf32, #tpu.memory_space<vmem>>, %arg3: memref<2x128x128xf32, #tpu.memory_space<vmem>>, %arg4: memref<1x1x128xf32, #tpu.memory_space<vmem>>, %arg5: memref<8x8x128xf32, #tpu.memory_space<vmem>>, %arg6: memref<2x8x128xf32, #tpu.memory_space<vmem>>) attributes {dimension_semantics = [#tpu.dimension_semantics<arbitrary>], iteration_bounds = array<i64: 1>, scalar_prefetch = 0 : i64, scratch_operands = 1 : i64, tpu.core_type = #tpu.core_type<tc>, window_params = [{transform_indices = @transform_0, window_bounds = array<i64: 8, 8, 128>}, {pipeline_mode = #tpu.pipeline_mode<synchronous>, transform_indices = @transform_1, window_bounds = array<i64: 1, 128, 128>}, {pipeline_mode = #tpu.pipeline_mode<synchronous>, transform_indices = @transform_2, window_bounds = array<i64: 2, 128, 128>}, {pipeline_mode = #tpu.pipeline_mode<synchronous>, transform_indices = @transform_3, window_bounds = array<i64: 1, 1, 128>}, {transform_indices = @transform_4, window_bounds = array<i64: 8, 8, 128>}]} {
    %c0_i32 = arith.constant 0 : i32
    %0 = arith.cmpi eq, %arg0, %c0_i32 : i32
    %1 = arith.extui %0 : i1 to i32
    %c0_i32_0 = arith.constant 0 : i32
    %2 = arith.cmpi ne, %1, %c0_i32_0 : i32
    scf.if %2 {
      %cst_247 = arith.constant 0.000000e+00 : f32
      %275 = vector.broadcast %cst_247 : f32 to vector<2x8x128xf32>
      %c0_248 = arith.constant 0 : index
      %c0_249 = arith.constant 0 : index
      %c0_250 = arith.constant 0 : index
      %276 = vector.load %arg6[%c0_248, %c0_249, %c0_250] : memref<2x8x128xf32, #tpu.memory_space<vmem>>, vector<2x8x128xf32>
      tpu.vector_store %arg6[%c0_248, %c0_249, %c0_250], %275 {strides = array<i32>} : memref<2x8x128xf32, #tpu.memory_space<vmem>>, vector<2x8x128xf32>,
    } else {
    }
    %c0_i32_1 = arith.constant 0 : i32
    %3 = arith.index_cast %c0_i32_1 : i32 to index
    %c0 = arith.constant 0 : index
    %c0_2 = arith.constant 0 : index
    %4 = vector.load %arg1[%3, %c0, %c0_2] : memref<8x8x128xf32, #tpu.memory_space<vmem>>, vector<1x8x128xf32>
    %5 = vector.shape_cast %4 : vector<1x8x128xf32> to vector<8x128xf32>
    %c0_3 = arith.constant 0 : index
    %c0_4 = arith.constant 0 : index
    %c0_5 = arith.constant 0 : index
    %6 = vector.load %arg6[%c0_3, %c0_4, %c0_5] : memref<2x8x128xf32, #tpu.memory_space<vmem>>, vector<1x8x128xf32>
    %7 = vector.shape_cast %6 : vector<1x8x128xf32> to vector<8x128xf32>
    %c0_6 = arith.constant 0 : index
    %c0_7 = arith.constant 0 : index
    %c0_8 = arith.constant 0 : index
    %8 = vector.load %arg3[%c0_6, %c0_7, %c0_8] : memref<2x128x128xf32, #tpu.memory_space<vmem>>, vector<1x128x128xf32>
    %9 = vector.shape_cast %8 : vector<1x128x128xf32> to vector<128x128xf32>
    %cst = arith.constant dense<0.000000e+00> : vector<8x128xf32>
    %10 = tpu.matmul %7, %9, %cst {dimension_numbers = #tpu.dot_dimension_numbers<[1], [0], [0], [1], [0, 0, 1, 1], [], []>} : vector<8x128xf32>, vector<128x128xf32>, vector<8x128xf32> -> vector<8x128xf32>
    %11 = arith.addf %5, %10 : vector<8x128xf32>
    %12 = math.tanh %11 : vector<8x128xf32>
    %c0_9 = arith.constant 0 : index
    %c0_10 = arith.constant 0 : index
    %c0_11 = arith.constant 0 : index
    %13 = vector.load %arg6[%c0_9, %c0_10, %c0_11] : memref<2x8x128xf32, #tpu.memory_space<vmem>>, vector<1x8x128xf32>
    %14 = vector.shape_cast %13 : vector<1x8x128xf32> to vector<8x128xf32>
    %15 = vector.shape_cast %12 : vector<8x128xf32> to vector<1x8x128xf32>
    tpu.vector_store %arg6[%c0_9, %c0_10, %c0_11], %15 {strides = array<i32>} : memref<2x8x128xf32, #tpu.memory_space<vmem>>, vector<1x8x128xf32>,
    %c0_12 = arith.constant 0 : index
    %c0_13 = arith.constant 0 : index
    %c0_14 = arith.constant 0 : index
    %16 = vector.load %arg2[%c0_12, %c0_13, %c0_14] : memref<1x128x128xf32, #tpu.memory_space<vmem>>, vector<1x128x128xf32>
    %17 = vector.shape_cast %16 : vector<1x128x128xf32> to vector<128x128xf32>
    %cst_15 = arith.constant dense<0.000000e+00> : vector<8x128xf32>
    %18 = tpu.matmul %12, %17, %cst_15 {dimension_numbers = #tpu.dot_dimension_numbers<[1], [0], [0], [1], [0, 0, 1, 1], [], []>} : vector<8x128xf32>, vector<128x128xf32>, vector<8x128xf32> -> vector<8x128xf32>
    %c0_16 = arith.constant 0 : index
    %c0_17 = arith.constant 0 : index
    %c0_18 = arith.constant 0 : index
    %19 = vector.load %arg4[%c0_16, %c0_17, %c0_18] : memref<1x1x128xf32, #tpu.memory_space<vmem>>, vector<1x1x128xf32>
    %20 = vector.shape_cast %19 : vector<1x1x128xf32> to vector<1x128xf32>
    %21 = vector.broadcast %20 : vector<1x128xf32> to vector<8x128xf32>
    %22 = arith.addf %18, %21 : vector<8x128xf32>
    %c1 = arith.constant 1 : index
    %c0_19 = arith.constant 0 : index
    %c0_20 = arith.constant 0 : index
    %23 = vector.load %arg6[%c1, %c0_19, %c0_20] : memref<2x8x128xf32, #tpu.memory_space<vmem>>, vector<1x8x128xf32>
    %24 = vector.shape_cast %23 : vector<1x8x128xf32> to vector<8x128xf32>
    %c1_21 = arith.constant 1 : index
    %c0_22 = arith.constant 0 : index
    %c0_23 = arith.constant 0 : index
    %25 = vector.load %arg3[%c1_21, %c0_22, %c0_23] : memref<2x128x128xf32, #tpu.memory_space<vmem>>, vector<1x128x128xf32>
    %26 = vector.shape_cast %25 : vector<1x128x128xf32> to vector<128x128xf32>
    %cst_24 = arith.constant dense<0.000000e+00> : vector<8x128xf32>
    %27 = tpu.matmul %24, %26, %cst_24 {dimension_numbers = #tpu.dot_dimension_numbers<[1], [0], [0], [1], [0, 0, 1, 1], [], []>} : vector<8x128xf32>, vector<128x128xf32>, vector<8x128xf32> -> vector<8x128xf32>
    %28 = arith.addf %22, %27 : vector<8x128xf32>
    %29 = math.tanh %28 : vector<8x128xf32>
    %c1_25 = arith.constant 1 : index
    %c0_26 = arith.constant 0 : index
    %c0_27 = arith.constant 0 : index
    %30 = vector.load %arg6[%c1_25, %c0_26, %c0_27] : memref<2x8x128xf32, #tpu.memory_space<vmem>>, vector<1x8x128xf32>
    %31 = vector.shape_cast %30 : vector<1x8x128xf32> to vector<8x128xf32>
    %32 = vector.shape_cast %29 : vector<8x128xf32> to vector<1x8x128xf32>
    tpu.vector_store %arg6[%c1_25, %c0_26, %c0_27], %32 {strides = array<i32>} : memref<2x8x128xf32, #tpu.memory_space<vmem>>, vector<1x8x128xf32>,
    %33 = arith.index_cast %c0_i32_1 : i32 to index
    %c0_28 = arith.constant 0 : index
    %c0_29 = arith.constant 0 : index
    %34 = vector.load %arg5[%33, %c0_28, %c0_29] : memref<8x8x128xf32, #tpu.memory_space<vmem>>, vector<1x8x128xf32>
    %35 = vector.shape_cast %34 : vector<1x8x128xf32> to vector<8x128xf32>
    %36 = vector.shape_cast %29 : vector<8x128xf32> to vector<1x8x128xf32>
    tpu.vector_store %arg5[%33, %c0_28, %c0_29], %36 {strides = array<i32>} : memref<8x8x128xf32, #tpu.memory_space<vmem>>, vector<1x8x128xf32>,
    %c1_i32 = arith.constant 1 : i32
    %37 = arith.index_cast %c1_i32 : i32 to index
    %c0_30 = arith.constant 0 : index
    %c0_31 = arith.constant 0 : index
    %38 = vector.load %arg1[%37, %c0_30, %c0_31] : memref<8x8x128xf32, #tpu.memory_space<vmem>>, vector<1x8x128xf32>
    %39 = vector.shape_cast %38 : vector<1x8x128xf32> to vector<8x128xf32>
    %c0_32 = arith.constant 0 : index
    %c0_33 = arith.constant 0 : index
    %c0_34 = arith.constant 0 : index
    %40 = vector.load %arg6[%c0_32, %c0_33, %c0_34] : memref<2x8x128xf32, #tpu.memory_space<vmem>>, vector<1x8x128xf32>
    %41 = vector.shape_cast %40 : vector<1x8x128xf32> to vector<8x128xf32>
    %c0_35 = arith.constant 0 : index
    %c0_36 = arith.constant 0 : index
    %c0_37 = arith.constant 0 : index
    %42 = vector.load %arg3[%c0_35, %c0_36, %c0_37] : memref<2x128x128xf32, #tpu.memory_space<vmem>>, vector<1x128x128xf32>
    %43 = vector.shape_cast %42 : vector<1x128x128xf32> to vector<128x128xf32>
    %cst_38 = arith.constant dense<0.000000e+00> : vector<8x128xf32>
    %44 = tpu.matmul %41, %43, %cst_38 {dimension_numbers = #tpu.dot_dimension_numbers<[1], [0], [0], [1], [0, 0, 1, 1], [], []>} : vector<8x128xf32>, vector<128x128xf32>, vector<8x128xf32> -> vector<8x128xf32>
    %45 = arith.addf %39, %44 : vector<8x128xf32>
    %46 = math.tanh %45 : vector<8x128xf32>
    %c0_39 = arith.constant 0 : index
    %c0_40 = arith.constant 0 : index
    %c0_41 = arith.constant 0 : index
    %47 = vector.load %arg6[%c0_39, %c0_40, %c0_41] : memref<2x8x128xf32, #tpu.memory_space<vmem>>, vector<1x8x128xf32>
    %48 = vector.shape_cast %47 : vector<1x8x128xf32> to vector<8x128xf32>
    %49 = vector.shape_cast %46 : vector<8x128xf32> to vector<1x8x128xf32>
    tpu.vector_store %arg6[%c0_39, %c0_40, %c0_41], %49 {strides = array<i32>} : memref<2x8x128xf32, #tpu.memory_space<vmem>>, vector<1x8x128xf32>,
    %c0_42 = arith.constant 0 : index
    %c0_43 = arith.constant 0 : index
    %c0_44 = arith.constant 0 : index
    %50 = vector.load %arg2[%c0_42, %c0_43, %c0_44] : memref<1x128x128xf32, #tpu.memory_space<vmem>>, vector<1x128x128xf32>
    %51 = vector.shape_cast %50 : vector<1x128x128xf32> to vector<128x128xf32>
    %cst_45 = arith.constant dense<0.000000e+00> : vector<8x128xf32>
    %52 = tpu.matmul %46, %51, %cst_45 {dimension_numbers = #tpu.dot_dimension_numbers<[1], [0], [0], [1], [0, 0, 1, 1], [], []>} : vector<8x128xf32>, vector<128x128xf32>, vector<8x128xf32> -> vector<8x128xf32>
    %c0_46 = arith.constant 0 : index
    %c0_47 = arith.constant 0 : index
    %c0_48 = arith.constant 0 : index
    %53 = vector.load %arg4[%c0_46, %c0_47, %c0_48] : memref<1x1x128xf32, #tpu.memory_space<vmem>>, vector<1x1x128xf32>
    %54 = vector.shape_cast %53 : vector<1x1x128xf32> to vector<1x128xf32>
    %55 = vector.broadcast %54 : vector<1x128xf32> to vector<8x128xf32>
    %56 = arith.addf %52, %55 : vector<8x128xf32>
    %c1_49 = arith.constant 1 : index
    %c0_50 = arith.constant 0 : index
    %c0_51 = arith.constant 0 : index
    %57 = vector.load %arg6[%c1_49, %c0_50, %c0_51] : memref<2x8x128xf32, #tpu.memory_space<vmem>>, vector<1x8x128xf32>
    %58 = vector.shape_cast %57 : vector<1x8x128xf32> to vector<8x128xf32>
    %c1_52 = arith.constant 1 : index
    %c0_53 = arith.constant 0 : index
    %c0_54 = arith.constant 0 : index
    %59 = vector.load %arg3[%c1_52, %c0_53, %c0_54] : memref<2x128x128xf32, #tpu.memory_space<vmem>>, vector<1x128x128xf32>
    %60 = vector.shape_cast %59 : vector<1x128x128xf32> to vector<128x128xf32>
    %cst_55 = arith.constant dense<0.000000e+00> : vector<8x128xf32>
    %61 = tpu.matmul %58, %60, %cst_55 {dimension_numbers = #tpu.dot_dimension_numbers<[1], [0], [0], [1], [0, 0, 1, 1], [], []>} : vector<8x128xf32>, vector<128x128xf32>, vector<8x128xf32> -> vector<8x128xf32>
    %62 = arith.addf %56, %61 : vector<8x128xf32>
    %63 = math.tanh %62 : vector<8x128xf32>
    %c1_56 = arith.constant 1 : index
    %c0_57 = arith.constant 0 : index
    %c0_58 = arith.constant 0 : index
    %64 = vector.load %arg6[%c1_56, %c0_57, %c0_58] : memref<2x8x128xf32, #tpu.memory_space<vmem>>, vector<1x8x128xf32>
    %65 = vector.shape_cast %64 : vector<1x8x128xf32> to vector<8x128xf32>
    %66 = vector.shape_cast %63 : vector<8x128xf32> to vector<1x8x128xf32>
    tpu.vector_store %arg6[%c1_56, %c0_57, %c0_58], %66 {strides = array<i32>} : memref<2x8x128xf32, #tpu.memory_space<vmem>>, vector<1x8x128xf32>,
    %67 = arith.index_cast %c1_i32 : i32 to index
    %c0_59 = arith.constant 0 : index
    %c0_60 = arith.constant 0 : index
    %68 = vector.load %arg5[%67, %c0_59, %c0_60] : memref<8x8x128xf32, #tpu.memory_space<vmem>>, vector<1x8x128xf32>
    %69 = vector.shape_cast %68 : vector<1x8x128xf32> to vector<8x128xf32>
    %70 = vector.shape_cast %63 : vector<8x128xf32> to vector<1x8x128xf32>
    tpu.vector_store %arg5[%67, %c0_59, %c0_60], %70 {strides = array<i32>} : memref<8x8x128xf32, #tpu.memory_space<vmem>>, vector<1x8x128xf32>,
    %c2_i32 = arith.constant 2 : i32
    %71 = arith.index_cast %c2_i32 : i32 to index
    %c0_61 = arith.constant 0 : index
    %c0_62 = arith.constant 0 : index
    %72 = vector.load %arg1[%71, %c0_61, %c0_62] : memref<8x8x128xf32, #tpu.memory_space<vmem>>, vector<1x8x128xf32>
    %73 = vector.shape_cast %72 : vector<1x8x128xf32> to vector<8x128xf32>
    %c0_63 = arith.constant 0 : index
    %c0_64 = arith.constant 0 : index
    %c0_65 = arith.constant 0 : index
    %74 = vector.load %arg6[%c0_63, %c0_64, %c0_65] : memref<2x8x128xf32, #tpu.memory_space<vmem>>, vector<1x8x128xf32>
    %75 = vector.shape_cast %74 : vector<1x8x128xf32> to vector<8x128xf32>
    %c0_66 = arith.constant 0 : index
    %c0_67 = arith.constant 0 : index
    %c0_68 = arith.constant 0 : index
    %76 = vector.load %arg3[%c0_66, %c0_67, %c0_68] : memref<2x128x128xf32, #tpu.memory_space<vmem>>, vector<1x128x128xf32>
    %77 = vector.shape_cast %76 : vector<1x128x128xf32> to vector<128x128xf32>
    %cst_69 = arith.constant dense<0.000000e+00> : vector<8x128xf32>
    %78 = tpu.matmul %75, %77, %cst_69 {dimension_numbers = #tpu.dot_dimension_numbers<[1], [0], [0], [1], [0, 0, 1, 1], [], []>} : vector<8x128xf32>, vector<128x128xf32>, vector<8x128xf32> -> vector<8x128xf32>
    %79 = arith.addf %73, %78 : vector<8x128xf32>
    %80 = math.tanh %79 : vector<8x128xf32>
    %c0_70 = arith.constant 0 : index
    %c0_71 = arith.constant 0 : index
    %c0_72 = arith.constant 0 : index
    %81 = vector.load %arg6[%c0_70, %c0_71, %c0_72] : memref<2x8x128xf32, #tpu.memory_space<vmem>>, vector<1x8x128xf32>
    %82 = vector.shape_cast %81 : vector<1x8x128xf32> to vector<8x128xf32>
    %83 = vector.shape_cast %80 : vector<8x128xf32> to vector<1x8x128xf32>
    tpu.vector_store %arg6[%c0_70, %c0_71, %c0_72], %83 {strides = array<i32>} : memref<2x8x128xf32, #tpu.memory_space<vmem>>, vector<1x8x128xf32>,
    %c0_73 = arith.constant 0 : index
    %c0_74 = arith.constant 0 : index
    %c0_75 = arith.constant 0 : index
    %84 = vector.load %arg2[%c0_73, %c0_74, %c0_75] : memref<1x128x128xf32, #tpu.memory_space<vmem>>, vector<1x128x128xf32>
    %85 = vector.shape_cast %84 : vector<1x128x128xf32> to vector<128x128xf32>
    %cst_76 = arith.constant dense<0.000000e+00> : vector<8x128xf32>
    %86 = tpu.matmul %80, %85, %cst_76 {dimension_numbers = #tpu.dot_dimension_numbers<[1], [0], [0], [1], [0, 0, 1, 1], [], []>} : vector<8x128xf32>, vector<128x128xf32>, vector<8x128xf32> -> vector<8x128xf32>
    %c0_77 = arith.constant 0 : index
    %c0_78 = arith.constant 0 : index
    %c0_79 = arith.constant 0 : index
    %87 = vector.load %arg4[%c0_77, %c0_78, %c0_79] : memref<1x1x128xf32, #tpu.memory_space<vmem>>, vector<1x1x128xf32>
    %88 = vector.shape_cast %87 : vector<1x1x128xf32> to vector<1x128xf32>
    %89 = vector.broadcast %88 : vector<1x128xf32> to vector<8x128xf32>
    %90 = arith.addf %86, %89 : vector<8x128xf32>
    %c1_80 = arith.constant 1 : index
    %c0_81 = arith.constant 0 : index
    %c0_82 = arith.constant 0 : index
    %91 = vector.load %arg6[%c1_80, %c0_81, %c0_82] : memref<2x8x128xf32, #tpu.memory_space<vmem>>, vector<1x8x128xf32>
    %92 = vector.shape_cast %91 : vector<1x8x128xf32> to vector<8x128xf32>
    %c1_83 = arith.constant 1 : index
    %c0_84 = arith.constant 0 : index
    %c0_85 = arith.constant 0 : index
    %93 = vector.load %arg3[%c1_83, %c0_84, %c0_85] : memref<2x128x128xf32, #tpu.memory_space<vmem>>, vector<1x128x128xf32>
    %94 = vector.shape_cast %93 : vector<1x128x128xf32> to vector<128x128xf32>
    %cst_86 = arith.constant dense<0.000000e+00> : vector<8x128xf32>
    %95 = tpu.matmul %92, %94, %cst_86 {dimension_numbers = #tpu.dot_dimension_numbers<[1], [0], [0], [1], [0, 0, 1, 1], [], []>} : vector<8x128xf32>, vector<128x128xf32>, vector<8x128xf32> -> vector<8x128xf32>
    %96 = arith.addf %90, %95 : vector<8x128xf32>
    %97 = math.tanh %96 : vector<8x128xf32>
    %c1_87 = arith.constant 1 : index
    %c0_88 = arith.constant 0 : index
    %c0_89 = arith.constant 0 : index
    %98 = vector.load %arg6[%c1_87, %c0_88, %c0_89] : memref<2x8x128xf32, #tpu.memory_space<vmem>>, vector<1x8x128xf32>
    %99 = vector.shape_cast %98 : vector<1x8x128xf32> to vector<8x128xf32>
    %100 = vector.shape_cast %97 : vector<8x128xf32> to vector<1x8x128xf32>
    tpu.vector_store %arg6[%c1_87, %c0_88, %c0_89], %100 {strides = array<i32>} : memref<2x8x128xf32, #tpu.memory_space<vmem>>, vector<1x8x128xf32>,
    %101 = arith.index_cast %c2_i32 : i32 to index
    %c0_90 = arith.constant 0 : index
    %c0_91 = arith.constant 0 : index
    %102 = vector.load %arg5[%101, %c0_90, %c0_91] : memref<8x8x128xf32, #tpu.memory_space<vmem>>, vector<1x8x128xf32>
    %103 = vector.shape_cast %102 : vector<1x8x128xf32> to vector<8x128xf32>
    %104 = vector.shape_cast %97 : vector<8x128xf32> to vector<1x8x128xf32>
    tpu.vector_store %arg5[%101, %c0_90, %c0_91], %104 {strides = array<i32>} : memref<8x8x128xf32, #tpu.memory_space<vmem>>, vector<1x8x128xf32>,
    %c3_i32 = arith.constant 3 : i32
    %105 = arith.index_cast %c3_i32 : i32 to index
    %c0_92 = arith.constant 0 : index
    %c0_93 = arith.constant 0 : index
    %106 = vector.load %arg1[%105, %c0_92, %c0_93] : memref<8x8x128xf32, #tpu.memory_space<vmem>>, vector<1x8x128xf32>
    %107 = vector.shape_cast %106 : vector<1x8x128xf32> to vector<8x128xf32>
    %c0_94 = arith.constant 0 : index
    %c0_95 = arith.constant 0 : index
    %c0_96 = arith.constant 0 : index
    %108 = vector.load %arg6[%c0_94, %c0_95, %c0_96] : memref<2x8x128xf32, #tpu.memory_space<vmem>>, vector<1x8x128xf32>
    %109 = vector.shape_cast %108 : vector<1x8x128xf32> to vector<8x128xf32>
    %c0_97 = arith.constant 0 : index
    %c0_98 = arith.constant 0 : index
    %c0_99 = arith.constant 0 : index
    %110 = vector.load %arg3[%c0_97, %c0_98, %c0_99] : memref<2x128x128xf32, #tpu.memory_space<vmem>>, vector<1x128x128xf32>
    %111 = vector.shape_cast %110 : vector<1x128x128xf32> to vector<128x128xf32>
    %cst_100 = arith.constant dense<0.000000e+00> : vector<8x128xf32>
    %112 = tpu.matmul %109, %111, %cst_100 {dimension_numbers = #tpu.dot_dimension_numbers<[1], [0], [0], [1], [0, 0, 1, 1], [], []>} : vector<8x128xf32>, vector<128x128xf32>, vector<8x128xf32> -> vector<8x128xf32>
    %113 = arith.addf %107, %112 : vector<8x128xf32>
    %114 = math.tanh %113 : vector<8x128xf32>
    %c0_101 = arith.constant 0 : index
    %c0_102 = arith.constant 0 : index
    %c0_103 = arith.constant 0 : index
    %115 = vector.load %arg6[%c0_101, %c0_102, %c0_103] : memref<2x8x128xf32, #tpu.memory_space<vmem>>, vector<1x8x128xf32>
    %116 = vector.shape_cast %115 : vector<1x8x128xf32> to vector<8x128xf32>
    %117 = vector.shape_cast %114 : vector<8x128xf32> to vector<1x8x128xf32>
    tpu.vector_store %arg6[%c0_101, %c0_102, %c0_103], %117 {strides = array<i32>} : memref<2x8x128xf32, #tpu.memory_space<vmem>>, vector<1x8x128xf32>,
    %c0_104 = arith.constant 0 : index
    %c0_105 = arith.constant 0 : index
    %c0_106 = arith.constant 0 : index
    %118 = vector.load %arg2[%c0_104, %c0_105, %c0_106] : memref<1x128x128xf32, #tpu.memory_space<vmem>>, vector<1x128x128xf32>
    %119 = vector.shape_cast %118 : vector<1x128x128xf32> to vector<128x128xf32>
    %cst_107 = arith.constant dense<0.000000e+00> : vector<8x128xf32>
    %120 = tpu.matmul %114, %119, %cst_107 {dimension_numbers = #tpu.dot_dimension_numbers<[1], [0], [0], [1], [0, 0, 1, 1], [], []>} : vector<8x128xf32>, vector<128x128xf32>, vector<8x128xf32> -> vector<8x128xf32>
    %c0_108 = arith.constant 0 : index
    %c0_109 = arith.constant 0 : index
    %c0_110 = arith.constant 0 : index
    %121 = vector.load %arg4[%c0_108, %c0_109, %c0_110] : memref<1x1x128xf32, #tpu.memory_space<vmem>>, vector<1x1x128xf32>
    %122 = vector.shape_cast %121 : vector<1x1x128xf32> to vector<1x128xf32>
    %123 = vector.broadcast %122 : vector<1x128xf32> to vector<8x128xf32>
    %124 = arith.addf %120, %123 : vector<8x128xf32>
    %c1_111 = arith.constant 1 : index
    %c0_112 = arith.constant 0 : index
    %c0_113 = arith.constant 0 : index
    %125 = vector.load %arg6[%c1_111, %c0_112, %c0_113] : memref<2x8x128xf32, #tpu.memory_space<vmem>>, vector<1x8x128xf32>
    %126 = vector.shape_cast %125 : vector<1x8x128xf32> to vector<8x128xf32>
    %c1_114 = arith.constant 1 : index
    %c0_115 = arith.constant 0 : index
    %c0_116 = arith.constant 0 : index
    %127 = vector.load %arg3[%c1_114, %c0_115, %c0_116] : memref<2x128x128xf32, #tpu.memory_space<vmem>>, vector<1x128x128xf32>
    %128 = vector.shape_cast %127 : vector<1x128x128xf32> to vector<128x128xf32>
    %cst_117 = arith.constant dense<0.000000e+00> : vector<8x128xf32>
    %129 = tpu.matmul %126, %128, %cst_117 {dimension_numbers = #tpu.dot_dimension_numbers<[1], [0], [0], [1], [0, 0, 1, 1], [], []>} : vector<8x128xf32>, vector<128x128xf32>, vector<8x128xf32> -> vector<8x128xf32>
    %130 = arith.addf %124, %129 : vector<8x128xf32>
    %131 = math.tanh %130 : vector<8x128xf32>
    %c1_118 = arith.constant 1 : index
    %c0_119 = arith.constant 0 : index
    %c0_120 = arith.constant 0 : index
    %132 = vector.load %arg6[%c1_118, %c0_119, %c0_120] : memref<2x8x128xf32, #tpu.memory_space<vmem>>, vector<1x8x128xf32>
    %133 = vector.shape_cast %132 : vector<1x8x128xf32> to vector<8x128xf32>
    %134 = vector.shape_cast %131 : vector<8x128xf32> to vector<1x8x128xf32>
    tpu.vector_store %arg6[%c1_118, %c0_119, %c0_120], %134 {strides = array<i32>} : memref<2x8x128xf32, #tpu.memory_space<vmem>>, vector<1x8x128xf32>,
    %135 = arith.index_cast %c3_i32 : i32 to index
    %c0_121 = arith.constant 0 : index
    %c0_122 = arith.constant 0 : index
    %136 = vector.load %arg5[%135, %c0_121, %c0_122] : memref<8x8x128xf32, #tpu.memory_space<vmem>>, vector<1x8x128xf32>
    %137 = vector.shape_cast %136 : vector<1x8x128xf32> to vector<8x128xf32>
    %138 = vector.shape_cast %131 : vector<8x128xf32> to vector<1x8x128xf32>
    tpu.vector_store %arg5[%135, %c0_121, %c0_122], %138 {strides = array<i32>} : memref<8x8x128xf32, #tpu.memory_space<vmem>>, vector<1x8x128xf32>,
    %c4_i32 = arith.constant 4 : i32
    %139 = arith.index_cast %c4_i32 : i32 to index
    %c0_123 = arith.constant 0 : index
    %c0_124 = arith.constant 0 : index
    %140 = vector.load %arg1[%139, %c0_123, %c0_124] : memref<8x8x128xf32, #tpu.memory_space<vmem>>, vector<1x8x128xf32>
    %141 = vector.shape_cast %140 : vector<1x8x128xf32> to vector<8x128xf32>
    %c0_125 = arith.constant 0 : index
    %c0_126 = arith.constant 0 : index
    %c0_127 = arith.constant 0 : index
    %142 = vector.load %arg6[%c0_125, %c0_126, %c0_127] : memref<2x8x128xf32, #tpu.memory_space<vmem>>, vector<1x8x128xf32>
    %143 = vector.shape_cast %142 : vector<1x8x128xf32> to vector<8x128xf32>
    %c0_128 = arith.constant 0 : index
    %c0_129 = arith.constant 0 : index
    %c0_130 = arith.constant 0 : index
    %144 = vector.load %arg3[%c0_128, %c0_129, %c0_130] : memref<2x128x128xf32, #tpu.memory_space<vmem>>, vector<1x128x128xf32>
    %145 = vector.shape_cast %144 : vector<1x128x128xf32> to vector<128x128xf32>
    %cst_131 = arith.constant dense<0.000000e+00> : vector<8x128xf32>
    %146 = tpu.matmul %143, %145, %cst_131 {dimension_numbers = #tpu.dot_dimension_numbers<[1], [0], [0], [1], [0, 0, 1, 1], [], []>} : vector<8x128xf32>, vector<128x128xf32>, vector<8x128xf32> -> vector<8x128xf32>
    %147 = arith.addf %141, %146 : vector<8x128xf32>
    %148 = math.tanh %147 : vector<8x128xf32>
    %c0_132 = arith.constant 0 : index
    %c0_133 = arith.constant 0 : index
    %c0_134 = arith.constant 0 : index
    %149 = vector.load %arg6[%c0_132, %c0_133, %c0_134] : memref<2x8x128xf32, #tpu.memory_space<vmem>>, vector<1x8x128xf32>
    %150 = vector.shape_cast %149 : vector<1x8x128xf32> to vector<8x128xf32>
    %151 = vector.shape_cast %148 : vector<8x128xf32> to vector<1x8x128xf32>
    tpu.vector_store %arg6[%c0_132, %c0_133, %c0_134], %151 {strides = array<i32>} : memref<2x8x128xf32, #tpu.memory_space<vmem>>, vector<1x8x128xf32>,
    %c0_135 = arith.constant 0 : index
    %c0_136 = arith.constant 0 : index
    %c0_137 = arith.constant 0 : index
    %152 = vector.load %arg2[%c0_135, %c0_136, %c0_137] : memref<1x128x128xf32, #tpu.memory_space<vmem>>, vector<1x128x128xf32>
    %153 = vector.shape_cast %152 : vector<1x128x128xf32> to vector<128x128xf32>
    %cst_138 = arith.constant dense<0.000000e+00> : vector<8x128xf32>
    %154 = tpu.matmul %148, %153, %cst_138 {dimension_numbers = #tpu.dot_dimension_numbers<[1], [0], [0], [1], [0, 0, 1, 1], [], []>} : vector<8x128xf32>, vector<128x128xf32>, vector<8x128xf32> -> vector<8x128xf32>
    %c0_139 = arith.constant 0 : index
    %c0_140 = arith.constant 0 : index
    %c0_141 = arith.constant 0 : index
    %155 = vector.load %arg4[%c0_139, %c0_140, %c0_141] : memref<1x1x128xf32, #tpu.memory_space<vmem>>, vector<1x1x128xf32>
    %156 = vector.shape_cast %155 : vector<1x1x128xf32> to vector<1x128xf32>
    %157 = vector.broadcast %156 : vector<1x128xf32> to vector<8x128xf32>
    %158 = arith.addf %154, %157 : vector<8x128xf32>
    %c1_142 = arith.constant 1 : index
    %c0_143 = arith.constant 0 : index
    %c0_144 = arith.constant 0 : index
    %159 = vector.load %arg6[%c1_142, %c0_143, %c0_144] : memref<2x8x128xf32, #tpu.memory_space<vmem>>, vector<1x8x128xf32>
    %160 = vector.shape_cast %159 : vector<1x8x128xf32> to vector<8x128xf32>
    %c1_145 = arith.constant 1 : index
    %c0_146 = arith.constant 0 : index
    %c0_147 = arith.constant 0 : index
    %161 = vector.load %arg3[%c1_145, %c0_146, %c0_147] : memref<2x128x128xf32, #tpu.memory_space<vmem>>, vector<1x128x128xf32>
    %162 = vector.shape_cast %161 : vector<1x128x128xf32> to vector<128x128xf32>
    %cst_148 = arith.constant dense<0.000000e+00> : vector<8x128xf32>
    %163 = tpu.matmul %160, %162, %cst_148 {dimension_numbers = #tpu.dot_dimension_numbers<[1], [0], [0], [1], [0, 0, 1, 1], [], []>} : vector<8x128xf32>, vector<128x128xf32>, vector<8x128xf32> -> vector<8x128xf32>
    %164 = arith.addf %158, %163 : vector<8x128xf32>
    %165 = math.tanh %164 : vector<8x128xf32>
    %c1_149 = arith.constant 1 : index
    %c0_150 = arith.constant 0 : index
    %c0_151 = arith.constant 0 : index
    %166 = vector.load %arg6[%c1_149, %c0_150, %c0_151] : memref<2x8x128xf32, #tpu.memory_space<vmem>>, vector<1x8x128xf32>
    %167 = vector.shape_cast %166 : vector<1x8x128xf32> to vector<8x128xf32>
    %168 = vector.shape_cast %165 : vector<8x128xf32> to vector<1x8x128xf32>
    tpu.vector_store %arg6[%c1_149, %c0_150, %c0_151], %168 {strides = array<i32>} : memref<2x8x128xf32, #tpu.memory_space<vmem>>, vector<1x8x128xf32>,
    %169 = arith.index_cast %c4_i32 : i32 to index
    %c0_152 = arith.constant 0 : index
    %c0_153 = arith.constant 0 : index
    %170 = vector.load %arg5[%169, %c0_152, %c0_153] : memref<8x8x128xf32, #tpu.memory_space<vmem>>, vector<1x8x128xf32>
    %171 = vector.shape_cast %170 : vector<1x8x128xf32> to vector<8x128xf32>
    %172 = vector.shape_cast %165 : vector<8x128xf32> to vector<1x8x128xf32>
    tpu.vector_store %arg5[%169, %c0_152, %c0_153], %172 {strides = array<i32>} : memref<8x8x128xf32, #tpu.memory_space<vmem>>, vector<1x8x128xf32>,
    %c5_i32 = arith.constant 5 : i32
    %173 = arith.index_cast %c5_i32 : i32 to index
    %c0_154 = arith.constant 0 : index
    %c0_155 = arith.constant 0 : index
    %174 = vector.load %arg1[%173, %c0_154, %c0_155] : memref<8x8x128xf32, #tpu.memory_space<vmem>>, vector<1x8x128xf32>
    %175 = vector.shape_cast %174 : vector<1x8x128xf32> to vector<8x128xf32>
    %c0_156 = arith.constant 0 : index
    %c0_157 = arith.constant 0 : index
    %c0_158 = arith.constant 0 : index
    %176 = vector.load %arg6[%c0_156, %c0_157, %c0_158] : memref<2x8x128xf32, #tpu.memory_space<vmem>>, vector<1x8x128xf32>
    %177 = vector.shape_cast %176 : vector<1x8x128xf32> to vector<8x128xf32>
    %c0_159 = arith.constant 0 : index
    %c0_160 = arith.constant 0 : index
    %c0_161 = arith.constant 0 : index
    %178 = vector.load %arg3[%c0_159, %c0_160, %c0_161] : memref<2x128x128xf32, #tpu.memory_space<vmem>>, vector<1x128x128xf32>
    %179 = vector.shape_cast %178 : vector<1x128x128xf32> to vector<128x128xf32>
    %cst_162 = arith.constant dense<0.000000e+00> : vector<8x128xf32>
    %180 = tpu.matmul %177, %179, %cst_162 {dimension_numbers = #tpu.dot_dimension_numbers<[1], [0], [0], [1], [0, 0, 1, 1], [], []>} : vector<8x128xf32>, vector<128x128xf32>, vector<8x128xf32> -> vector<8x128xf32>
    %181 = arith.addf %175, %180 : vector<8x128xf32>
    %182 = math.tanh %181 : vector<8x128xf32>
    %c0_163 = arith.constant 0 : index
    %c0_164 = arith.constant 0 : index
    %c0_165 = arith.constant 0 : index
    %183 = vector.load %arg6[%c0_163, %c0_164, %c0_165] : memref<2x8x128xf32, #tpu.memory_space<vmem>>, vector<1x8x128xf32>
    %184 = vector.shape_cast %183 : vector<1x8x128xf32> to vector<8x128xf32>
    %185 = vector.shape_cast %182 : vector<8x128xf32> to vector<1x8x128xf32>
    tpu.vector_store %arg6[%c0_163, %c0_164, %c0_165], %185 {strides = array<i32>} : memref<2x8x128xf32, #tpu.memory_space<vmem>>, vector<1x8x128xf32>,
    %c0_166 = arith.constant 0 : index
    %c0_167 = arith.constant 0 : index
    %c0_168 = arith.constant 0 : index
    %186 = vector.load %arg2[%c0_166, %c0_167, %c0_168] : memref<1x128x128xf32, #tpu.memory_space<vmem>>, vector<1x128x128xf32>
    %187 = vector.shape_cast %186 : vector<1x128x128xf32> to vector<128x128xf32>
    %cst_169 = arith.constant dense<0.000000e+00> : vector<8x128xf32>
    %188 = tpu.matmul %182, %187, %cst_169 {dimension_numbers = #tpu.dot_dimension_numbers<[1], [0], [0], [1], [0, 0, 1, 1], [], []>} : vector<8x128xf32>, vector<128x128xf32>, vector<8x128xf32> -> vector<8x128xf32>
    %c0_170 = arith.constant 0 : index
    %c0_171 = arith.constant 0 : index
    %c0_172 = arith.constant 0 : index
    %189 = vector.load %arg4[%c0_170, %c0_171, %c0_172] : memref<1x1x128xf32, #tpu.memory_space<vmem>>, vector<1x1x128xf32>
    %190 = vector.shape_cast %189 : vector<1x1x128xf32> to vector<1x128xf32>
    %191 = vector.broadcast %190 : vector<1x128xf32> to vector<8x128xf32>
    %192 = arith.addf %188, %191 : vector<8x128xf32>
    %c1_173 = arith.constant 1 : index
    %c0_174 = arith.constant 0 : index
    %c0_175 = arith.constant 0 : index
    %193 = vector.load %arg6[%c1_173, %c0_174, %c0_175] : memref<2x8x128xf32, #tpu.memory_space<vmem>>, vector<1x8x128xf32>
    %194 = vector.shape_cast %193 : vector<1x8x128xf32> to vector<8x128xf32>
    %c1_176 = arith.constant 1 : index
    %c0_177 = arith.constant 0 : index
    %c0_178 = arith.constant 0 : index
    %195 = vector.load %arg3[%c1_176, %c0_177, %c0_178] : memref<2x128x128xf32, #tpu.memory_space<vmem>>, vector<1x128x128xf32>
    %196 = vector.shape_cast %195 : vector<1x128x128xf32> to vector<128x128xf32>
    %cst_179 = arith.constant dense<0.000000e+00> : vector<8x128xf32>
    %197 = tpu.matmul %194, %196, %cst_179 {dimension_numbers = #tpu.dot_dimension_numbers<[1], [0], [0], [1], [0, 0, 1, 1], [], []>} : vector<8x128xf32>, vector<128x128xf32>, vector<8x128xf32> -> vector<8x128xf32>
    %198 = arith.addf %192, %197 : vector<8x128xf32>
    %199 = math.tanh %198 : vector<8x128xf32>
    %c1_180 = arith.constant 1 : index
    %c0_181 = arith.constant 0 : index
    %c0_182 = arith.constant 0 : index
    %200 = vector.load %arg6[%c1_180, %c0_181, %c0_182] : memref<2x8x128xf32, #tpu.memory_space<vmem>>, vector<1x8x128xf32>
    %201 = vector.shape_cast %200 : vector<1x8x128xf32> to vector<8x128xf32>
    %202 = vector.shape_cast %199 : vector<8x128xf32> to vector<1x8x128xf32>
    tpu.vector_store %arg6[%c1_180, %c0_181, %c0_182], %202 {strides = array<i32>} : memref<2x8x128xf32, #tpu.memory_space<vmem>>, vector<1x8x128xf32>,
    %203 = arith.index_cast %c5_i32 : i32 to index
    %c0_183 = arith.constant 0 : index
    %c0_184 = arith.constant 0 : index
    %204 = vector.load %arg5[%203, %c0_183, %c0_184] : memref<8x8x128xf32, #tpu.memory_space<vmem>>, vector<1x8x128xf32>
    %205 = vector.shape_cast %204 : vector<1x8x128xf32> to vector<8x128xf32>
    %206 = vector.shape_cast %199 : vector<8x128xf32> to vector<1x8x128xf32>
    tpu.vector_store %arg5[%203, %c0_183, %c0_184], %206 {strides = array<i32>} : memref<8x8x128xf32, #tpu.memory_space<vmem>>, vector<1x8x128xf32>,
    %c6_i32 = arith.constant 6 : i32
    %207 = arith.index_cast %c6_i32 : i32 to index
    %c0_185 = arith.constant 0 : index
    %c0_186 = arith.constant 0 : index
    %208 = vector.load %arg1[%207, %c0_185, %c0_186] : memref<8x8x128xf32, #tpu.memory_space<vmem>>, vector<1x8x128xf32>
    %209 = vector.shape_cast %208 : vector<1x8x128xf32> to vector<8x128xf32>
    %c0_187 = arith.constant 0 : index
    %c0_188 = arith.constant 0 : index
    %c0_189 = arith.constant 0 : index
    %210 = vector.load %arg6[%c0_187, %c0_188, %c0_189] : memref<2x8x128xf32, #tpu.memory_space<vmem>>, vector<1x8x128xf32>
    %211 = vector.shape_cast %210 : vector<1x8x128xf32> to vector<8x128xf32>
    %c0_190 = arith.constant 0 : index
    %c0_191 = arith.constant 0 : index
    %c0_192 = arith.constant 0 : index
    %212 = vector.load %arg3[%c0_190, %c0_191, %c0_192] : memref<2x128x128xf32, #tpu.memory_space<vmem>>, vector<1x128x128xf32>
    %213 = vector.shape_cast %212 : vector<1x128x128xf32> to vector<128x128xf32>
    %cst_193 = arith.constant dense<0.000000e+00> : vector<8x128xf32>
    %214 = tpu.matmul %211, %213, %cst_193 {dimension_numbers = #tpu.dot_dimension_numbers<[1], [0], [0], [1], [0, 0, 1, 1], [], []>} : vector<8x128xf32>, vector<128x128xf32>, vector<8x128xf32> -> vector<8x128xf32>
    %215 = arith.addf %209, %214 : vector<8x128xf32>
    %216 = math.tanh %215 : vector<8x128xf32>
    %c0_194 = arith.constant 0 : index
    %c0_195 = arith.constant 0 : index
    %c0_196 = arith.constant 0 : index
    %217 = vector.load %arg6[%c0_194, %c0_195, %c0_196] : memref<2x8x128xf32, #tpu.memory_space<vmem>>, vector<1x8x128xf32>
    %218 = vector.shape_cast %217 : vector<1x8x128xf32> to vector<8x128xf32>
    %219 = vector.shape_cast %216 : vector<8x128xf32> to vector<1x8x128xf32>
    tpu.vector_store %arg6[%c0_194, %c0_195, %c0_196], %219 {strides = array<i32>} : memref<2x8x128xf32, #tpu.memory_space<vmem>>, vector<1x8x128xf32>,
    %c0_197 = arith.constant 0 : index
    %c0_198 = arith.constant 0 : index
    %c0_199 = arith.constant 0 : index
    %220 = vector.load %arg2[%c0_197, %c0_198, %c0_199] : memref<1x128x128xf32, #tpu.memory_space<vmem>>, vector<1x128x128xf32>
    %221 = vector.shape_cast %220 : vector<1x128x128xf32> to vector<128x128xf32>
    %cst_200 = arith.constant dense<0.000000e+00> : vector<8x128xf32>
    %222 = tpu.matmul %216, %221, %cst_200 {dimension_numbers = #tpu.dot_dimension_numbers<[1], [0], [0], [1], [0, 0, 1, 1], [], []>} : vector<8x128xf32>, vector<128x128xf32>, vector<8x128xf32> -> vector<8x128xf32>
    %c0_201 = arith.constant 0 : index
    %c0_202 = arith.constant 0 : index
    %c0_203 = arith.constant 0 : index
    %223 = vector.load %arg4[%c0_201, %c0_202, %c0_203] : memref<1x1x128xf32, #tpu.memory_space<vmem>>, vector<1x1x128xf32>
    %224 = vector.shape_cast %223 : vector<1x1x128xf32> to vector<1x128xf32>
    %225 = vector.broadcast %224 : vector<1x128xf32> to vector<8x128xf32>
    %226 = arith.addf %222, %225 : vector<8x128xf32>
    %c1_204 = arith.constant 1 : index
    %c0_205 = arith.constant 0 : index
    %c0_206 = arith.constant 0 : index
    %227 = vector.load %arg6[%c1_204, %c0_205, %c0_206] : memref<2x8x128xf32, #tpu.memory_space<vmem>>, vector<1x8x128xf32>
    %228 = vector.shape_cast %227 : vector<1x8x128xf32> to vector<8x128xf32>
    %c1_207 = arith.constant 1 : index
    %c0_208 = arith.constant 0 : index
    %c0_209 = arith.constant 0 : index
    %229 = vector.load %arg3[%c1_207, %c0_208, %c0_209] : memref<2x128x128xf32, #tpu.memory_space<vmem>>, vector<1x128x128xf32>
    %230 = vector.shape_cast %229 : vector<1x128x128xf32> to vector<128x128xf32>
    %cst_210 = arith.constant dense<0.000000e+00> : vector<8x128xf32>
    %231 = tpu.matmul %228, %230, %cst_210 {dimension_numbers = #tpu.dot_dimension_numbers<[1], [0], [0], [1], [0, 0, 1, 1], [], []>} : vector<8x128xf32>, vector<128x128xf32>, vector<8x128xf32> -> vector<8x128xf32>
    %232 = arith.addf %226, %231 : vector<8x128xf32>
    %233 = math.tanh %232 : vector<8x128xf32>
    %c1_211 = arith.constant 1 : index
    %c0_212 = arith.constant 0 : index
    %c0_213 = arith.constant 0 : index
    %234 = vector.load %arg6[%c1_211, %c0_212, %c0_213] : memref<2x8x128xf32, #tpu.memory_space<vmem>>, vector<1x8x128xf32>
    %235 = vector.shape_cast %234 : vector<1x8x128xf32> to vector<8x128xf32>
    %236 = vector.shape_cast %233 : vector<8x128xf32> to vector<1x8x128xf32>
    tpu.vector_store %arg6[%c1_211, %c0_212, %c0_213], %236 {strides = array<i32>} : memref<2x8x128xf32, #tpu.memory_space<vmem>>, vector<1x8x128xf32>,
    %237 = arith.index_cast %c6_i32 : i32 to index
    %c0_214 = arith.constant 0 : index
    %c0_215 = arith.constant 0 : index
    %238 = vector.load %arg5[%237, %c0_214, %c0_215] : memref<8x8x128xf32, #tpu.memory_space<vmem>>, vector<1x8x128xf32>
    %239 = vector.shape_cast %238 : vector<1x8x128xf32> to vector<8x128xf32>
    %240 = vector.shape_cast %233 : vector<8x128xf32> to vector<1x8x128xf32>
    tpu.vector_store %arg5[%237, %c0_214, %c0_215], %240 {strides = array<i32>} : memref<8x8x128xf32, #tpu.memory_space<vmem>>, vector<1x8x128xf32>,
    %c7_i32 = arith.constant 7 : i32
    %241 = arith.index_cast %c7_i32 : i32 to index
    %c0_216 = arith.constant 0 : index
    %c0_217 = arith.constant 0 : index
    %242 = vector.load %arg1[%241, %c0_216, %c0_217] : memref<8x8x128xf32, #tpu.memory_space<vmem>>, vector<1x8x128xf32>
    %243 = vector.shape_cast %242 : vector<1x8x128xf32> to vector<8x128xf32>
    %c0_218 = arith.constant 0 : index
    %c0_219 = arith.constant 0 : index
    %c0_220 = arith.constant 0 : index
    %244 = vector.load %arg6[%c0_218, %c0_219, %c0_220] : memref<2x8x128xf32, #tpu.memory_space<vmem>>, vector<1x8x128xf32>
    %245 = vector.shape_cast %244 : vector<1x8x128xf32> to vector<8x128xf32>
    %c0_221 = arith.constant 0 : index
    %c0_222 = arith.constant 0 : index
    %c0_223 = arith.constant 0 : index
    %246 = vector.load %arg3[%c0_221, %c0_222, %c0_223] : memref<2x128x128xf32, #tpu.memory_space<vmem>>, vector<1x128x128xf32>
    %247 = vector.shape_cast %246 : vector<1x128x128xf32> to vector<128x128xf32>
    %cst_224 = arith.constant dense<0.000000e+00> : vector<8x128xf32>
    %248 = tpu.matmul %245, %247, %cst_224 {dimension_numbers = #tpu.dot_dimension_numbers<[1], [0], [0], [1], [0, 0, 1, 1], [], []>} : vector<8x128xf32>, vector<128x128xf32>, vector<8x128xf32> -> vector<8x128xf32>
    %249 = arith.addf %243, %248 : vector<8x128xf32>
    %250 = math.tanh %249 : vector<8x128xf32>
    %c0_225 = arith.constant 0 : index
    %c0_226 = arith.constant 0 : index
    %c0_227 = arith.constant 0 : index
    %251 = vector.load %arg6[%c0_225, %c0_226, %c0_227] : memref<2x8x128xf32, #tpu.memory_space<vmem>>, vector<1x8x128xf32>
    %252 = vector.shape_cast %251 : vector<1x8x128xf32> to vector<8x128xf32>
    %253 = vector.shape_cast %250 : vector<8x128xf32> to vector<1x8x128xf32>
    tpu.vector_store %arg6[%c0_225, %c0_226, %c0_227], %253 {strides = array<i32>} : memref<2x8x128xf32, #tpu.memory_space<vmem>>, vector<1x8x128xf32>,
    %c0_228 = arith.constant 0 : index
    %c0_229 = arith.constant 0 : index
    %c0_230 = arith.constant 0 : index
    %254 = vector.load %arg2[%c0_228, %c0_229, %c0_230] : memref<1x128x128xf32, #tpu.memory_space<vmem>>, vector<1x128x128xf32>
    %255 = vector.shape_cast %254 : vector<1x128x128xf32> to vector<128x128xf32>
    %cst_231 = arith.constant dense<0.000000e+00> : vector<8x128xf32>
    %256 = tpu.matmul %250, %255, %cst_231 {dimension_numbers = #tpu.dot_dimension_numbers<[1], [0], [0], [1], [0, 0, 1, 1], [], []>} : vector<8x128xf32>, vector<128x128xf32>, vector<8x128xf32> -> vector<8x128xf32>
    %c0_232 = arith.constant 0 : index
    %c0_233 = arith.constant 0 : index
    %c0_234 = arith.constant 0 : index
    %257 = vector.load %arg4[%c0_232, %c0_233, %c0_234] : memref<1x1x128xf32, #tpu.memory_space<vmem>>, vector<1x1x128xf32>
    %258 = vector.shape_cast %257 : vector<1x1x128xf32> to vector<1x128xf32>
    %259 = vector.broadcast %258 : vector<1x128xf32> to vector<8x128xf32>
    %260 = arith.addf %256, %259 : vector<8x128xf32>
    %c1_235 = arith.constant 1 : index
    %c0_236 = arith.constant 0 : index
    %c0_237 = arith.constant 0 : index
    %261 = vector.load %arg6[%c1_235, %c0_236, %c0_237] : memref<2x8x128xf32, #tpu.memory_space<vmem>>, vector<1x8x128xf32>
    %262 = vector.shape_cast %261 : vector<1x8x128xf32> to vector<8x128xf32>
    %c1_238 = arith.constant 1 : index
    %c0_239 = arith.constant 0 : index
    %c0_240 = arith.constant 0 : index
    %263 = vector.load %arg3[%c1_238, %c0_239, %c0_240] : memref<2x128x128xf32, #tpu.memory_space<vmem>>, vector<1x128x128xf32>
    %264 = vector.shape_cast %263 : vector<1x128x128xf32> to vector<128x128xf32>
    %cst_241 = arith.constant dense<0.000000e+00> : vector<8x128xf32>
    %265 = tpu.matmul %262, %264, %cst_241 {dimension_numbers = #tpu.dot_dimension_numbers<[1], [0], [0], [1], [0, 0, 1, 1], [], []>} : vector<8x128xf32>, vector<128x128xf32>, vector<8x128xf32> -> vector<8x128xf32>
    %266 = arith.addf %260, %265 : vector<8x128xf32>
    %267 = math.tanh %266 : vector<8x128xf32>
    %c1_242 = arith.constant 1 : index
    %c0_243 = arith.constant 0 : index
    %c0_244 = arith.constant 0 : index
    %268 = vector.load %arg6[%c1_242, %c0_243, %c0_244] : memref<2x8x128xf32, #tpu.memory_space<vmem>>, vector<1x8x128xf32>
    %269 = vector.shape_cast %268 : vector<1x8x128xf32> to vector<8x128xf32>
    %270 = vector.shape_cast %267 : vector<8x128xf32> to vector<1x8x128xf32>
    tpu.vector_store %arg6[%c1_242, %c0_243, %c0_244], %270 {strides = array<i32>} : memref<2x8x128xf32, #tpu.memory_space<vmem>>, vector<1x8x128xf32>,
    %271 = arith.index_cast %c7_i32 : i32 to index
    %c0_245 = arith.constant 0 : index
    %c0_246 = arith.constant 0 : index
    %272 = vector.load %arg5[%271, %c0_245, %c0_246] : memref<8x8x128xf32, #tpu.memory_space<vmem>>, vector<1x8x128xf32>
    %273 = vector.shape_cast %272 : vector<1x8x128xf32> to vector<8x128xf32>
    %274 = vector.shape_cast %267 : vector<8x128xf32> to vector<1x8x128xf32>
    tpu.vector_store %arg5[%271, %c0_245, %c0_246], %274 {strides = array<i32>} : memref<8x8x128xf32, #tpu.memory_space<vmem>>, vector<1x8x128xf32>,
    %c8_i32 = arith.constant 8 : i32
    return
  }
  func.func @transform_0(%arg0: i32) -> (i32, i32, i32) {
    %c0_i32 = arith.constant 0 : i32
    %c0_i32_0 = arith.constant 0 : i32
    %c0_i32_1 = arith.constant 0 : i32
    return %arg0, %c0_i32, %c0_i32_0 : i32, i32, i32
  }
  func.func @transform_1(%arg0: i32) -> (i32, i32, i32) {
    %c0_i32 = arith.constant 0 : i32
    %c0_i32_0 = arith.constant 0 : i32
    %c0_i32_1 = arith.constant 0 : i32
    %c0_i32_2 = arith.constant 0 : i32
    return %c0_i32, %c0_i32_0, %c0_i32_1 : i32, i32, i32
  }
  func.func @transform_2(%arg0: i32) -> (i32, i32, i32) {
    %c0_i32 = arith.constant 0 : i32
    %c0_i32_0 = arith.constant 0 : i32
    %c0_i32_1 = arith.constant 0 : i32
    %c0_i32_2 = arith.constant 0 : i32
    return %c0_i32, %c0_i32_0, %c0_i32_1 : i32, i32, i32
  }
  func.func @transform_3(%arg0: i32) -> (i32, i32, i32) {
    %c0_i32 = arith.constant 0 : i32
    %c0_i32_0 = arith.constant 0 : i32
    %c0_i32_1 = arith.constant 0 : i32
    %c0_i32_2 = arith.constant 0 : i32
    return %c0_i32, %c0_i32_0, %c0_i32_1 : i32, i32, i32
  }
  func.func @transform_4(%arg0: i32) -> (i32, i32, i32) {
    %c0_i32 = arith.constant 0 : i32
    %c0_i32_0 = arith.constant 0 : i32
    %c0_i32_1 = arith.constant 0 : i32
    return %arg0, %c0_i32, %c0_i32_0 : i32, i32, i32
  }
}

</mosaic_0001>

<llo_original>
// kernel: rnn_forward.1
$region0: #{rnn_forward.1}
  #allocation0 [shape = 'u32[]', space=smem, size = 0x4, offset = 0x4, fixed_abs, tag = 'smem constant byte address 0x4 - core index']
  #allocation1 [shape = 'u32[72,128]{1,0:T(1,128)}', space=vmem, size = 0x9000, scoped, tag = 'internal scratch']
  #allocation2 [shape = 'f32[2,8,128]{2,1,0:T(8,128)}', space=vmem, size = 0x2000, scoped, tag = 'scratch operand']
  %s0 = inlined_call_operand.vmem [shape: f32[8,8,128], index: 0, kind: input, shape index: {}]
  %s1 = inlined_call_operand.vmem [shape: f32[1,128,128], index: 1, kind: input, shape index: {}]
  %s2 = inlined_call_operand.hbm [shape: f32[2,128,128], index: 2, kind: input, shape index: {}]
  %s3 = inlined_call_operand.vmem [shape: f32[1,1,128], index: 3, kind: input, shape index: {}]
  %s4 = inlined_call_operand.vmem [shape: f32[8,8,128], index: 4, kind: output, shape index: {}]
  %s5 = sld [smem:[#allocation0]]
  $region34: #{rnn_forward.1} parent=0
    _
  %s7 = ssub.s32 1, %s5
  %s8 = scalar_select 0, %s7, %s5
  $region1: #{rnn_forward.1} parent=0
    #allocation3 [shape = 'u8[131072]{0}', space=vmem, size = 0x20000, scoped, tag = 'input window, operand 2, single buffered']
    #allocation4 [shape = 's32[1]{0}', space=sflag, size = 0x4, scoped, tag = 'scoped memory for rnn_forward.1']
    %9 = vsyncpa [#allocation4], 0
    // Predicated region
    $region2: #{rnn_forward.1} parent=1 // pred_check
      _
    $region3: #{rnn_forward.1} parent=1 // pred_check_branch
      %11 = sbr.rel (0) target = $region5
    $region4: #{rnn_forward.1} parent=1 // pred_region
      _
    $region5: #{rnn_forward.1} parent=1 // pred_fallthru
      _
    // Predicated region
    $region6: #{rnn_forward.1} parent=1 // pred_check
      _
    $region7: #{rnn_forward.1} parent=1 // pred_check_branch
      %13 = sbr.rel (0) target = $region9
    $region8: #{rnn_forward.1} parent=1 // pred_region
      _
    $region9: #{rnn_forward.1} parent=1 // pred_fallthru
      _
    // Predicated region
    $region10: #{rnn_forward.1} parent=1 // pred_check
      _
    $region11: #{rnn_forward.1} parent=1 // pred_check_branch
      %15 = sbr.rel (0) target = $region13
    $region12: #{rnn_forward.1} parent=1 // pred_region
      %17 = vsyncadd [#allocation4], 0
      %s18 = sshll.u32 %s2, 4
      %s19 = int_to_ptr.hbm [resolvable:$true] %s18
      %s20 = sshll.u32 [#allocation3], 4
      %s21 = int_to_ptr.vmem [resolvable:$true] %s20
      %26 = dma.hbm_to_vmem [thread:$0]  %s19, 4096, %s21, [#allocation4], 128, 128, 8
    $region13: #{rnn_forward.1} parent=1 // pred_fallthru
      _
    // Predicated region
    $region14: #{rnn_forward.1} parent=1 // pred_check
      _
    $region15: #{rnn_forward.1} parent=1 // pred_check_branch
      %28 = sbr.rel (0) target = $region17
    $region16: #{rnn_forward.1} parent=1 // pred_region
      _
    $region17: #{rnn_forward.1} parent=1 // pred_fallthru
      _
    // Predicated region
    $region18: #{rnn_forward.1} parent=1 // pred_check
      _
    $region19: #{rnn_forward.1} parent=1 // pred_check_branch
      %30 = sbr.rel (0) target = $region21
    $region20: #{rnn_forward.1} parent=1 // pred_region
      %32 = dma.done [#allocation4], 4096
    $region21: #{rnn_forward.1} parent=1 // pred_fallthru
      _
    %p33 = scmp.eq.s32.totalorder 0, 0
    // Predicated region
    $region22: #{rnn_forward.1} parent=1 // pred_check
      %p34 = pneg %p33
    $region23: #{rnn_forward.1} parent=1 // pred_check_branch
      %36 = sbr.rel (%p34) target = $region25
    $region24: #{rnn_forward.1} parent=1 // pred_region
      %37 = vst [vmem:[#allocation2] sm:$0xff] 0.0
      %38 = vst [vmem:[#allocation2 + $0x8] sm:$0xff] 0.0
    $region25: #{rnn_forward.1} parent=1 // pred_fallthru
      _
    %v39 = vld [vmem:[%s0] sm:$0xff]
    %v40 = vld [vmem:[#allocation2] sm:$0xff]
    %v41 = vld [vmem:[#allocation3] sm:$0xff]
    %v42 = vld [vmem:[#allocation3 + $0x8] sm:$0xff]
    %v43 = vld [vmem:[#allocation3 + $0x10] sm:$0xff]
    %v44 = vld [vmem:[#allocation3 + $0x18] sm:$0xff]
    %v45 = vld [vmem:[#allocation3 + $0x20] sm:$0xff]
    %v46 = vld [vmem:[#allocation3 + $0x28] sm:$0xff]
    %v47 = vld [vmem:[#allocation3 + $0x30] sm:$0xff]
    %v48 = vld [vmem:[#allocation3 + $0x38] sm:$0xff]
    %v49 = vld [vmem:[#allocation3 + $0x40] sm:$0xff]
    %v50 = vld [vmem:[#allocation3 + $0x48] sm:$0xff]
    %v51 = vld [vmem:[#allocation3 + $0x50] sm:$0xff]
    %v52 = vld [vmem:[#allocation3 + $0x58] sm:$0xff]
    %v53 = vld [vmem:[#allocation3 + $0x60] sm:$0xff]
    %v54 = vld [vmem:[#allocation3 + $0x68] sm:$0xff]
    %v55 = vld [vmem:[#allocation3 + $0x70] sm:$0xff]
    %v56 = vld [vmem:[#allocation3 + $0x78] sm:$0xff]
    %57 = vmatpush.msra.mxu0 %v56
    %58 = vmatpush.msra.mxu0 %v55
    %59 = vmatpush.msra.mxu0 %v54
    %60 = vmatpush.msra.mxu0 %v53
    %61 = vmatpush.msra.mxu0 %v52
    %62 = vmatpush.msra.mxu0 %v51
    %63 = vmatpush.msra.mxu0 %v50
    %64 = vmatpush.msra.mxu0 %v49
    %65 = vmatpush.msra.mxu0 %v48
    %66 = vmatpush.msra.mxu0 %v47
    %67 = vmatpush.msra.mxu0 %v46
    %68 = vmatpush.msra.mxu0 %v45
    %69 = vmatpush.msra.mxu0 %v44
    %70 = vmatpush.msra.mxu0 %v43
    %71 = vmatpush.msra.mxu0 %v42
    %72 = vmatpush.msra.mxu0 %v41
    %73 = vmatmul.f32.gmra.mxu0 %v40
    %v74 = vpop.f32.mrf.mxu0
    %v75 = vadd.f32 0.0, %v74
    %76 = vdwg.mxu0
    %v77 = vadd.f32 %v39, %v75
    %v78 = vtanh.pop %v77
    %79 = vst [vmem:[#allocation2] sm:$0xff] %v78
    %v80 = vld [vmem:[%s1] sm:$0xff]
    %v81 = vld [vmem:[%s1 + $0x8] sm:$0xff]
    %v82 = vld [vmem:[%s1 + $0x10] sm:$0xff]
    %v83 = vld [vmem:[%s1 + $0x18] sm:$0xff]
    %v84 = vld [vmem:[%s1 + $0x20] sm:$0xff]
    %v85 = vld [vmem:[%s1 + $0x28] sm:$0xff]
    %v86 = vld [vmem:[%s1 + $0x30] sm:$0xff]
    %v87 = vld [vmem:[%s1 + $0x38] sm:$0xff]
    %v88 = vld [vmem:[%s1 + $0x40] sm:$0xff]
    %v89 = vld [vmem:[%s1 + $0x48] sm:$0xff]
    %v90 = vld [vmem:[%s1 + $0x50] sm:$0xff]
    %v91 = vld [vmem:[%s1 + $0x58] sm:$0xff]
    %v92 = vld [vmem:[%s1 + $0x60] sm:$0xff]
    %v93 = vld [vmem:[%s1 + $0x68] sm:$0xff]
    %v94 = vld [vmem:[%s1 + $0x70] sm:$0xff]
    %v95 = vld [vmem:[%s1 + $0x78] sm:$0xff]
    %v96 = vld [vmem:[%s3] sm:$0x1]
    %v98 = vperm.slane %v96, 0
    %100 = vmatpush.msra.mxu0 %v95
    %101 = vmatpush.msra.mxu0 %v94
    %102 = vmatpush.msra.mxu0 %v93
    %103 = vmatpush.msra.mxu0 %v92
    %104 = vmatpush.msra.mxu0 %v91
    %105 = vmatpush.msra.mxu0 %v90
    %106 = vmatpush.msra.mxu0 %v89
    %107 = vmatpush.msra.mxu0 %v88
    %108 = vmatpush.msra.mxu0 %v87
    %109 = vmatpush.msra.mxu0 %v86
    %110 = vmatpush.msra.mxu0 %v85
    %111 = vmatpush.msra.mxu0 %v84
    %112 = vmatpush.msra.mxu0 %v83
    %113 = vmatpush.msra.mxu0 %v82
    %114 = vmatpush.msra.mxu0 %v81
    %115 = vmatpush.msra.mxu0 %v80
    %116 = vmatmul.f32.gmra.mxu0 %v78
    %v117 = vpop.f32.mrf.mxu0
    %v118 = vadd.f32 %v98, %v117
    %119 = vdwg.mxu0
    %s120 = scalar_lea.vmem [#allocation2], 8
    %v121 = vld [vmem:[%s120] sm:$0xff]
    %s122 = scalar_lea.vmem [#allocation3], 128
    %v123 = vld [vmem:[%s122] sm:$0xff]
    %v124 = vld [vmem:[%s122 + $0x8] sm:$0xff]
    %v125 = vld [vmem:[%s122 + $0x10] sm:$0xff]
    %v126 = vld [vmem:[%s122 + $0x18] sm:$0xff]
    %v127 = vld [vmem:[%s122 + $0x20] sm:$0xff]
    %v128 = vld [vmem:[%s122 + $0x28] sm:$0xff]
    %v129 = vld [vmem:[%s122 + $0x30] sm:$0xff]
    %v130 = vld [vmem:[%s122 + $0x38] sm:$0xff]
    %v131 = vld [vmem:[%s122 + $0x40] sm:$0xff]
    %v132 = vld [vmem:[%s122 + $0x48] sm:$0xff]
    %v133 = vld [vmem:[%s122 + $0x50] sm:$0xff]
    %v134 = vld [vmem:[%s122 + $0x58] sm:$0xff]
    %v135 = vld [vmem:[%s122 + $0x60] sm:$0xff]
    %v136 = vld [vmem:[%s122 + $0x68] sm:$0xff]
    %v137 = vld [vmem:[%s122 + $0x70] sm:$0xff]
    %v138 = vld [vmem:[%s122 + $0x78] sm:$0xff]
    %139 = vmatpush.msra.mxu0 %v138
    %140 = vmatpush.msra.mxu0 %v137
    %141 = vmatpush.msra.mxu0 %v136
    %142 = vmatpush.msra.mxu0 %v135
    %143 = vmatpush.msra.mxu0 %v134
    %144 = vmatpush.msra.mxu0 %v133
    %145 = vmatpush.msra.mxu0 %v132
    %146 = vmatpush.msra.mxu0 %v131
    %147 = vmatpush.msra.mxu0 %v130
    %148 = vmatpush.msra.mxu0 %v129
    %149 = vmatpush.msra.mxu0 %v128
    %150 = vmatpush.msra.mxu0 %v127
    %151 = vmatpush.msra.mxu0 %v126
    %152 = vmatpush.msra.mxu0 %v125
    %153 = vmatpush.msra.mxu0 %v124
    %154 = vmatpush.msra.mxu0 %v123
    %155 = vmatmul.f32.gmra.mxu0 %v121
    %v156 = vpop.f32.mrf.mxu0
    %v157 = vadd.f32 0.0, %v156
    %158 = vdwg.mxu0
    %v159 = vadd.f32 %v118, %v157
    %v160 = vtanh.pop %v159
    %161 = vst [vmem:[%s120] sm:$0xff] %v160
    %162 = vst [vmem:[%s4] sm:$0xff] %v160
    %s163 = scalar_lea.vmem %s0, 8
    %v164 = vld [vmem:[%s163] sm:$0xff]
    %v165 = vld [vmem:[#allocation2] sm:$0xff]
    %v166 = vld [vmem:[#allocation3] sm:$0xff]
    %v167 = vld [vmem:[#allocation3 + $0x8] sm:$0xff]
    %v168 = vld [vmem:[#allocation3 + $0x10] sm:$0xff]
    %v169 = vld [vmem:[#allocation3 + $0x18] sm:$0xff]
    %v170 = vld [vmem:[#allocation3 + $0x20] sm:$0xff]
    %v171 = vld [vmem:[#allocation3 + $0x28] sm:$0xff]
    %v172 = vld [vmem:[#allocation3 + $0x30] sm:$0xff]
    %v173 = vld [vmem:[#allocation3 + $0x38] sm:$0xff]
    %v174 = vld [vmem:[#allocation3 + $0x40] sm:$0xff]
    %v175 = vld [vmem:[#allocation3 + $0x48] sm:$0xff]
    %v176 = vld [vmem:[#allocation3 + $0x50] sm:$0xff]
    %v177 = vld [vmem:[#allocation3 + $0x58] sm:$0xff]
    %v178 = vld [vmem:[#allocation3 + $0x60] sm:$0xff]
    %v179 = vld [vmem:[#allocation3 + $0x68] sm:$0xff]
    %v180 = vld [vmem:[#allocation3 + $0x70] sm:$0xff]
    %v181 = vld [vmem:[#allocation3 + $0x78] sm:$0xff]
    %182 = vmatpush.msra.mxu0 %v181
    %183 = vmatpush.msra.mxu0 %v180
    %184 = vmatpush.msra.mxu0 %v179
    %185 = vmatpush.msra.mxu0 %v178
    %186 = vmatpush.msra.mxu0 %v177
    %187 = vmatpush.msra.mxu0 %v176
    %188 = vmatpush.msra.mxu0 %v175
    %189 = vmatpush.msra.mxu0 %v174
    %190 = vmatpush.msra.mxu0 %v173
    %191 = vmatpush.msra.mxu0 %v172
    %192 = vmatpush.msra.mxu0 %v171
    %193 = vmatpush.msra.mxu0 %v170
    %194 = vmatpush.msra.mxu0 %v169
    %195 = vmatpush.msra.mxu0 %v168
    %196 = vmatpush.msra.mxu0 %v167
    %197 = vmatpush.msra.mxu0 %v166
    %198 = vmatmul.f32.gmra.mxu0 %v165
    %v199 = vpop.f32.mrf.mxu0
    %v200 = vadd.f32 0.0, %v199
    %201 = vdwg.mxu0
    %v202 = vadd.f32 %v164, %v200
    %v203 = vtanh.pop %v202
    %204 = vst [vmem:[#allocation2] sm:$0xff] %v203
    %v205 = vld [vmem:[%s1] sm:$0xff]
    %v206 = vld [vmem:[%s1 + $0x8] sm:$0xff]
    %v207 = vld [vmem:[%s1 + $0x10] sm:$0xff]
    %v208 = vld [vmem:[%s1 + $0x18] sm:$0xff]
    %v209 = vld [vmem:[%s1 + $0x20] sm:$0xff]
    %v210 = vld [vmem:[%s1 + $0x28] sm:$0xff]
    %v211 = vld [vmem:[%s1 + $0x30] sm:$0xff]
    %v212 = vld [vmem:[%s1 + $0x38] sm:$0xff]
    %v213 = vld [vmem:[%s1 + $0x40] sm:$0xff]
    %v214 = vld [vmem:[%s1 + $0x48] sm:$0xff]
    %v215 = vld [vmem:[%s1 + $0x50] sm:$0xff]
    %v216 = vld [vmem:[%s1 + $0x58] sm:$0xff]
    %v217 = vld [vmem:[%s1 + $0x60] sm:$0xff]
    %v218 = vld [vmem:[%s1 + $0x68] sm:$0xff]
    %v219 = vld [vmem:[%s1 + $0x70] sm:$0xff]
    %v220 = vld [vmem:[%s1 + $0x78] sm:$0xff]
    %v221 = vld [vmem:[%s3] sm:$0x1]
    %v223 = vperm.slane %v221, 0
    %225 = vmatpush.msra.mxu0 %v220
    %226 = vmatpush.msra.mxu0 %v219
    %227 = vmatpush.msra.mxu0 %v218
    %228 = vmatpush.msra.mxu0 %v217
    %229 = vmatpush.msra.mxu0 %v216
    %230 = vmatpush.msra.mxu0 %v215
    %231 = vmatpush.msra.mxu0 %v214
    %232 = vmatpush.msra.mxu0 %v213
    %233 = vmatpush.msra.mxu0 %v212
    %234 = vmatpush.msra.mxu0 %v211
    %235 = vmatpush.msra.mxu0 %v210
    %236 = vmatpush.msra.mxu0 %v209
    %237 = vmatpush.msra.mxu0 %v208
    %238 = vmatpush.msra.mxu0 %v207
    %239 = vmatpush.msra.mxu0 %v206
    %240 = vmatpush.msra.mxu0 %v205
    %241 = vmatmul.f32.gmra.mxu0 %v203
    %v242 = vpop.f32.mrf.mxu0
    %v243 = vadd.f32 %v223, %v242
    %244 = vdwg.mxu0
    %v245 = vld [vmem:[%s120] sm:$0xff]
    %v246 = vld [vmem:[%s122] sm:$0xff]
    %v247 = vld [vmem:[%s122 + $0x8] sm:$0xff]
    %v248 = vld [vmem:[%s122 + $0x10] sm:$0xff]
    %v249 = vld [vmem:[%s122 + $0x18] sm:$0xff]
    %v250 = vld [vmem:[%s122 + $0x20] sm:$0xff]
    %v251 = vld [vmem:[%s122 + $0x28] sm:$0xff]
    %v252 = vld [vmem:[%s122 + $0x30] sm:$0xff]
    %v253 = vld [vmem:[%s122 + $0x38] sm:$0xff]
    %v254 = vld [vmem:[%s122 + $0x40] sm:$0xff]
    %v255 = vld [vmem:[%s122 + $0x48] sm:$0xff]
    %v256 = vld [vmem:[%s122 + $0x50] sm:$0xff]
    %v257 = vld [vmem:[%s122 + $0x58] sm:$0xff]
    %v258 = vld [vmem:[%s122 + $0x60] sm:$0xff]
    %v259 = vld [vmem:[%s122 + $0x68] sm:$0xff]
    %v260 = vld [vmem:[%s122 + $0x70] sm:$0xff]
    %v261 = vld [vmem:[%s122 + $0x78] sm:$0xff]
    %262 = vmatpush.msra.mxu0 %v261
    %263 = vmatpush.msra.mxu0 %v260
    %264 = vmatpush.msra.mxu0 %v259
    %265 = vmatpush.msra.mxu0 %v258
    %266 = vmatpush.msra.mxu0 %v257
    %267 = vmatpush.msra.mxu0 %v256
    %268 = vmatpush.msra.mxu0 %v255
    %269 = vmatpush.msra.mxu0 %v254
    %270 = vmatpush.msra.mxu0 %v253
    %271 = vmatpush.msra.mxu0 %v252
    %272 = vmatpush.msra.mxu0 %v251
    %273 = vmatpush.msra.mxu0 %v250
    %274 = vmatpush.msra.mxu0 %v249
    %275 = vmatpush.msra.mxu0 %v248
    %276 = vmatpush.msra.mxu0 %v247
    %277 = vmatpush.msra.mxu0 %v246
    %278 = vmatmul.f32.gmra.mxu0 %v245
    %v279 = vpop.f32.mrf.mxu0
    %v280 = vadd.f32 0.0, %v279
    %281 = vdwg.mxu0
    %v282 = vadd.f32 %v243, %v280
    %v283 = vtanh.pop %v282
    %284 = vst [vmem:[%s120] sm:$0xff] %v283
    %s285 = scalar_lea.vmem %s4, 8
    %286 = vst [vmem:[%s285] sm:$0xff] %v283
    %s287 = scalar_lea.vmem %s0, 16
    %v288 = vld [vmem:[%s287] sm:$0xff]
    %v289 = vld [vmem:[#allocation2] sm:$0xff]
    %v290 = vld [vmem:[#allocation3] sm:$0xff]
    %v291 = vld [vmem:[#allocation3 + $0x8] sm:$0xff]
    %v292 = vld [vmem:[#allocation3 + $0x10] sm:$0xff]
    %v293 = vld [vmem:[#allocation3 + $0x18] sm:$0xff]
    %v294 = vld [vmem:[#allocation3 + $0x20] sm:$0xff]
    %v295 = vld [vmem:[#allocation3 + $0x28] sm:$0xff]
    %v296 = vld [vmem:[#allocation3 + $0x30] sm:$0xff]
    %v297 = vld [vmem:[#allocation3 + $0x38] sm:$0xff]
    %v298 = vld [vmem:[#allocation3 + $0x40] sm:$0xff]
    %v299 = vld [vmem:[#allocation3 + $0x48] sm:$0xff]
    %v300 = vld [vmem:[#allocation3 + $0x50] sm:$0xff]
    %v301 = vld [vmem:[#allocation3 + $0x58] sm:$0xff]
    %v302 = vld [vmem:[#allocation3 + $0x60] sm:$0xff]
    %v303 = vld [vmem:[#allocation3 + $0x68] sm:$0xff]
    %v304 = vld [vmem:[#allocation3 + $0x70] sm:$0xff]
    %v305 = vld [vmem:[#allocation3 + $0x78] sm:$0xff]
    %306 = vmatpush.msra.mxu0 %v305
    %307 = vmatpush.msra.mxu0 %v304
    %308 = vmatpush.msra.mxu0 %v303
    %309 = vmatpush.msra.mxu0 %v302
    %310 = vmatpush.msra.mxu0 %v301
    %311 = vmatpush.msra.mxu0 %v300
    %312 = vmatpush.msra.mxu0 %v299
    %313 = vmatpush.msra.mxu0 %v298
    %314 = vmatpush.msra.mxu0 %v297
    %315 = vmatpush.msra.mxu0 %v296
    %316 = vmatpush.msra.mxu0 %v295
    %317 = vmatpush.msra.mxu0 %v294
    %318 = vmatpush.msra.mxu0 %v293
    %319 = vmatpush.msra.mxu0 %v292
    %320 = vmatpush.msra.mxu0 %v291
    %321 = vmatpush.msra.mxu0 %v290
    %322 = vmatmul.f32.gmra.mxu0 %v289
    %v323 = vpop.f32.mrf.mxu0
    %v324 = vadd.f32 0.0, %v323
    %325 = vdwg.mxu0
    %v326 = vadd.f32 %v288, %v324
    %v327 = vtanh.pop %v326
    %328 = vst [vmem:[#allocation2] sm:$0xff] %v327
    %v329 = vld [vmem:[%s1] sm:$0xff]
    %v330 = vld [vmem:[%s1 + $0x8] sm:$0xff]
    %v331 = vld [vmem:[%s1 + $0x10] sm:$0xff]
    %v332 = vld [vmem:[%s1 + $0x18] sm:$0xff]
    %v333 = vld [vmem:[%s1 + $0x20] sm:$0xff]
    %v334 = vld [vmem:[%s1 + $0x28] sm:$0xff]
    %v335 = vld [vmem:[%s1 + $0x30] sm:$0xff]
    %v336 = vld [vmem:[%s1 + $0x38] sm:$0xff]
    %v337 = vld [vmem:[%s1 + $0x40] sm:$0xff]
    %v338 = vld [vmem:[%s1 + $0x48] sm:$0xff]
    %v339 = vld [vmem:[%s1 + $0x50] sm:$0xff]
    %v340 = vld [vmem:[%s1 + $0x58] sm:$0xff]
    %v341 = vld [vmem:[%s1 + $0x60] sm:$0xff]
    %v342 = vld [vmem:[%s1 + $0x68] sm:$0xff]
    %v343 = vld [vmem:[%s1 + $0x70] sm:$0xff]
    %v344 = vld [vmem:[%s1 + $0x78] sm:$0xff]
    %v345 = vld [vmem:[%s3] sm:$0x1]
    %v347 = vperm.slane %v345, 0
    %349 = vmatpush.msra.mxu0 %v344
    %350 = vmatpush.msra.mxu0 %v343
    %351 = vmatpush.msra.mxu0 %v342
    %352 = vmatpush.msra.mxu0 %v341
    %353 = vmatpush.msra.mxu0 %v340
    %354 = vmatpush.msra.mxu0 %v339
    %355 = vmatpush.msra.mxu0 %v338
    %356 = vmatpush.msra.mxu0 %v337
    %357 = vmatpush.msra.mxu0 %v336
    %358 = vmatpush.msra.mxu0 %v335
    %359 = vmatpush.msra.mxu0 %v334
    %360 = vmatpush.msra.mxu0 %v333
    %361 = vmatpush.msra.mxu0 %v332
    %362 = vmatpush.msra.mxu0 %v331
    %363 = vmatpush.msra.mxu0 %v330
    %364 = vmatpush.msra.mxu0 %v329
    %365 = vmatmul.f32.gmra.mxu0 %v327
    %v366 = vpop.f32.mrf.mxu0
    %v367 = vadd.f32 %v347, %v366
    %368 = vdwg.mxu0
    %v369 = vld [vmem:[%s120] sm:$0xff]
    %v370 = vld [vmem:[%s122] sm:$0xff]
    %v371 = vld [vmem:[%s122 + $0x8] sm:$0xff]
    %v372 = vld [vmem:[%s122 + $0x10] sm:$0xff]
    %v373 = vld [vmem:[%s122 + $0x18] sm:$0xff]
    %v374 = vld [vmem:[%s122 + $0x20] sm:$0xff]
    %v375 = vld [vmem:[%s122 + $0x28] sm:$0xff]
    %v376 = vld [vmem:[%s122 + $0x30] sm:$0xff]
    %v377 = vld [vmem:[%s122 + $0x38] sm:$0xff]
    %v378 = vld [vmem:[%s122 + $0x40] sm:$0xff]
    %v379 = vld [vmem:[%s122 + $0x48] sm:$0xff]
    %v380 = vld [vmem:[%s122 + $0x50] sm:$0xff]
    %v381 = vld [vmem:[%s122 + $0x58] sm:$0xff]
    %v382 = vld [vmem:[%s122 + $0x60] sm:$0xff]
    %v383 = vld [vmem:[%s122 + $0x68] sm:$0xff]
    %v384 = vld [vmem:[%s122 + $0x70] sm:$0xff]
    %v385 = vld [vmem:[%s122 + $0x78] sm:$0xff]
    %386 = vmatpush.msra.mxu0 %v385
    %387 = vmatpush.msra.mxu0 %v384
    %388 = vmatpush.msra.mxu0 %v383
    %389 = vmatpush.msra.mxu0 %v382
    %390 = vmatpush.msra.mxu0 %v381
    %391 = vmatpush.msra.mxu0 %v380
    %392 = vmatpush.msra.mxu0 %v379
    %393 = vmatpush.msra.mxu0 %v378
    %394 = vmatpush.msra.mxu0 %v377
    %395 = vmatpush.msra.mxu0 %v376
    %396 = vmatpush.msra.mxu0 %v375
    %397 = vmatpush.msra.mxu0 %v374
    %398 = vmatpush.msra.mxu0 %v373
    %399 = vmatpush.msra.mxu0 %v372
    %400 = vmatpush.msra.mxu0 %v371
    %401 = vmatpush.msra.mxu0 %v370
    %402 = vmatmul.f32.gmra.mxu0 %v369
    %v403 = vpop.f32.mrf.mxu0
    %v404 = vadd.f32 0.0, %v403
    %405 = vdwg.mxu0
    %v406 = vadd.f32 %v367, %v404
    %v407 = vtanh.pop %v406
    %408 = vst [vmem:[%s120] sm:$0xff] %v407
    %s409 = scalar_lea.vmem %s4, 16
    %410 = vst [vmem:[%s409] sm:$0xff] %v407
    %s411 = scalar_lea.vmem %s0, 24
    %v412 = vld [vmem:[%s411] sm:$0xff]
    %v413 = vld [vmem:[#allocation2] sm:$0xff]
    %v414 = vld [vmem:[#allocation3] sm:$0xff]
    %v415 = vld [vmem:[#allocation3 + $0x8] sm:$0xff]
    %v416 = vld [vmem:[#allocation3 + $0x10] sm:$0xff]
    %v417 = vld [vmem:[#allocation3 + $0x18] sm:$0xff]
    %v418 = vld [vmem:[#allocation3 + $0x20] sm:$0xff]
    %v419 = vld [vmem:[#allocation3 + $0x28] sm:$0xff]
    %v420 = vld [vmem:[#allocation3 + $0x30] sm:$0xff]
    %v421 = vld [vmem:[#allocation3 + $0x38] sm:$0xff]
    %v422 = vld [vmem:[#allocation3 + $0x40] sm:$0xff]
    %v423 = vld [vmem:[#allocation3 + $0x48] sm:$0xff]
    %v424 = vld [vmem:[#allocation3 + $0x50] sm:$0xff]
    %v425 = vld [vmem:[#allocation3 + $0x58] sm:$0xff]
    %v426 = vld [vmem:[#allocation3 + $0x60] sm:$0xff]
    %v427 = vld [vmem:[#allocation3 + $0x68] sm:$0xff]
    %v428 = vld [vmem:[#allocation3 + $0x70] sm:$0xff]
    %v429 = vld [vmem:[#allocation3 + $0x78] sm:$0xff]
    %430 = vmatpush.msra.mxu0 %v429
    %431 = vmatpush.msra.mxu0 %v428
    %432 = vmatpush.msra.mxu0 %v427
    %433 = vmatpush.msra.mxu0 %v426
    %434 = vmatpush.msra.mxu0 %v425
    %435 = vmatpush.msra.mxu0 %v424
    %436 = vmatpush.msra.mxu0 %v423
    %437 = vmatpush.msra.mxu0 %v422
    %438 = vmatpush.msra.mxu0 %v421
    %439 = vmatpush.msra.mxu0 %v420
    %440 = vmatpush.msra.mxu0 %v419
    %441 = vmatpush.msra.mxu0 %v418
    %442 = vmatpush.msra.mxu0 %v417
    %443 = vmatpush.msra.mxu0 %v416
    %444 = vmatpush.msra.mxu0 %v415
    %445 = vmatpush.msra.mxu0 %v414
    %446 = vmatmul.f32.gmra.mxu0 %v413
    %v447 = vpop.f32.mrf.mxu0
    %v448 = vadd.f32 0.0, %v447
    %449 = vdwg.mxu0
    %v450 = vadd.f32 %v412, %v448
    %v451 = vtanh.pop %v450
    %452 = vst [vmem:[#allocation2] sm:$0xff] %v451
    %v453 = vld [vmem:[%s1] sm:$0xff]
    %v454 = vld [vmem:[%s1 + $0x8] sm:$0xff]
    %v455 = vld [vmem:[%s1 + $0x10] sm:$0xff]
    %v456 = vld [vmem:[%s1 + $0x18] sm:$0xff]
    %v457 = vld [vmem:[%s1 + $0x20] sm:$0xff]
    %v458 = vld [vmem:[%s1 + $0x28] sm:$0xff]
    %v459 = vld [vmem:[%s1 + $0x30] sm:$0xff]
    %v460 = vld [vmem:[%s1 + $0x38] sm:$0xff]
    %v461 = vld [vmem:[%s1 + $0x40] sm:$0xff]
    %v462 = vld [vmem:[%s1 + $0x48] sm:$0xff]
    %v463 = vld [vmem:[%s1 + $0x50] sm:$0xff]
    %v464 = vld [vmem:[%s1 + $0x58] sm:$0xff]
    %v465 = vld [vmem:[%s1 + $0x60] sm:$0xff]
    %v466 = vld [vmem:[%s1 + $0x68] sm:$0xff]
    %v467 = vld [vmem:[%s1 + $0x70] sm:$0xff]
    %v468 = vld [vmem:[%s1 + $0x78] sm:$0xff]
    %v469 = vld [vmem:[%s3] sm:$0x1]
    %v471 = vperm.slane %v469, 0
    %473 = vmatpush.msra.mxu0 %v468
    %474 = vmatpush.msra.mxu0 %v467
    %475 = vmatpush.msra.mxu0 %v466
    %476 = vmatpush.msra.mxu0 %v465
    %477 = vmatpush.msra.mxu0 %v464
    %478 = vmatpush.msra.mxu0 %v463
    %479 = vmatpush.msra.mxu0 %v462
    %480 = vmatpush.msra.mxu0 %v461
    %481 = vmatpush.msra.mxu0 %v460
    %482 = vmatpush.msra.mxu0 %v459
    %483 = vmatpush.msra.mxu0 %v458
    %484 = vmatpush.msra.mxu0 %v457
    %485 = vmatpush.msra.mxu0 %v456
    %486 = vmatpush.msra.mxu0 %v455
    %487 = vmatpush.msra.mxu0 %v454
    %488 = vmatpush.msra.mxu0 %v453
    %489 = vmatmul.f32.gmra.mxu0 %v451
    %v490 = vpop.f32.mrf.mxu0
    %v491 = vadd.f32 %v471, %v490
    %492 = vdwg.mxu0
    %v493 = vld [vmem:[%s120] sm:$0xff]
    %v494 = vld [vmem:[%s122] sm:$0xff]
    %v495 = vld [vmem:[%s122 + $0x8] sm:$0xff]
    %v496 = vld [vmem:[%s122 + $0x10] sm:$0xff]
    %v497 = vld [vmem:[%s122 + $0x18] sm:$0xff]
    %v498 = vld [vmem:[%s122 + $0x20] sm:$0xff]
    %v499 = vld [vmem:[%s122 + $0x28] sm:$0xff]
    %v500 = vld [vmem:[%s122 + $0x30] sm:$0xff]
    %v501 = vld [vmem:[%s122 + $0x38] sm:$0xff]
    %v502 = vld [vmem:[%s122 + $0x40] sm:$0xff]
    %v503 = vld [vmem:[%s122 + $0x48] sm:$0xff]
    %v504 = vld [vmem:[%s122 + $0x50] sm:$0xff]
    %v505 = vld [vmem:[%s122 + $0x58] sm:$0xff]
    %v506 = vld [vmem:[%s122 + $0x60] sm:$0xff]
    %v507 = vld [vmem:[%s122 + $0x68] sm:$0xff]
    %v508 = vld [vmem:[%s122 + $0x70] sm:$0xff]
    %v509 = vld [vmem:[%s122 + $0x78] sm:$0xff]
    %510 = vmatpush.msra.mxu0 %v509
    %511 = vmatpush.msra.mxu0 %v508
    %512 = vmatpush.msra.mxu0 %v507
    %513 = vmatpush.msra.mxu0 %v506
    %514 = vmatpush.msra.mxu0 %v505
    %515 = vmatpush.msra.mxu0 %v504
    %516 = vmatpush.msra.mxu0 %v503
    %517 = vmatpush.msra.mxu0 %v502
    %518 = vmatpush.msra.mxu0 %v501
    %519 = vmatpush.msra.mxu0 %v500
    %520 = vmatpush.msra.mxu0 %v499
    %521 = vmatpush.msra.mxu0 %v498
    %522 = vmatpush.msra.mxu0 %v497
    %523 = vmatpush.msra.mxu0 %v496
    %524 = vmatpush.msra.mxu0 %v495
    %525 = vmatpush.msra.mxu0 %v494
    %526 = vmatmul.f32.gmra.mxu0 %v493
    %v527 = vpop.f32.mrf.mxu0
    %v528 = vadd.f32 0.0, %v527
    %529 = vdwg.mxu0
    %v530 = vadd.f32 %v491, %v528
    %v531 = vtanh.pop %v530
    %532 = vst [vmem:[%s120] sm:$0xff] %v531
    %s533 = scalar_lea.vmem %s4, 24
    %534 = vst [vmem:[%s533] sm:$0xff] %v531
    %s535 = scalar_lea.vmem %s0, 32
    %v536 = vld [vmem:[%s535] sm:$0xff]
    %v537 = vld [vmem:[#allocation2] sm:$0xff]
    %v538 = vld [vmem:[#allocation3] sm:$0xff]
    %v539 = vld [vmem:[#allocation3 + $0x8] sm:$0xff]
    %v540 = vld [vmem:[#allocation3 + $0x10] sm:$0xff]
    %v541 = vld [vmem:[#allocation3 + $0x18] sm:$0xff]
    %v542 = vld [vmem:[#allocation3 + $0x20] sm:$0xff]
    %v543 = vld [vmem:[#allocation3 + $0x28] sm:$0xff]
    %v544 = vld [vmem:[#allocation3 + $0x30] sm:$0xff]
    %v545 = vld [vmem:[#allocation3 + $0x38] sm:$0xff]
    %v546 = vld [vmem:[#allocation3 + $0x40] sm:$0xff]
    %v547 = vld [vmem:[#allocation3 + $0x48] sm:$0xff]
    %v548 = vld [vmem:[#allocation3 + $0x50] sm:$0xff]
    %v549 = vld [vmem:[#allocation3 + $0x58] sm:$0xff]
    %v550 = vld [vmem:[#allocation3 + $0x60] sm:$0xff]
    %v551 = vld [vmem:[#allocation3 + $0x68] sm:$0xff]
    %v552 = vld [vmem:[#allocation3 + $0x70] sm:$0xff]
    %v553 = vld [vmem:[#allocation3 + $0x78] sm:$0xff]
    %554 = vmatpush.msra.mxu0 %v553
    %555 = vmatpush.msra.mxu0 %v552
    %556 = vmatpush.msra.mxu0 %v551
    %557 = vmatpush.msra.mxu0 %v550
    %558 = vmatpush.msra.mxu0 %v549
    %559 = vmatpush.msra.mxu0 %v548
    %560 = vmatpush.msra.mxu0 %v547
    %561 = vmatpush.msra.mxu0 %v546
    %562 = vmatpush.msra.mxu0 %v545
    %563 = vmatpush.msra.mxu0 %v544
    %564 = vmatpush.msra.mxu0 %v543
    %565 = vmatpush.msra.mxu0 %v542
    %566 = vmatpush.msra.mxu0 %v541
    %567 = vmatpush.msra.mxu0 %v540
    %568 = vmatpush.msra.mxu0 %v539
    %569 = vmatpush.msra.mxu0 %v538
    %570 = vmatmul.f32.gmra.mxu0 %v537
    %v571 = vpop.f32.mrf.mxu0
    %v572 = vadd.f32 0.0, %v571
    %573 = vdwg.mxu0
    %v574 = vadd.f32 %v536, %v572
    %v575 = vtanh.pop %v574
    %576 = vst [vmem:[#allocation2] sm:$0xff] %v575
    %v577 = vld [vmem:[%s1] sm:$0xff]
    %v578 = vld [vmem:[%s1 + $0x8] sm:$0xff]
    %v579 = vld [vmem:[%s1 + $0x10] sm:$0xff]
    %v580 = vld [vmem:[%s1 + $0x18] sm:$0xff]
    %v581 = vld [vmem:[%s1 + $0x20] sm:$0xff]
    %v582 = vld [vmem:[%s1 + $0x28] sm:$0xff]
    %v583 = vld [vmem:[%s1 + $0x30] sm:$0xff]
    %v584 = vld [vmem:[%s1 + $0x38] sm:$0xff]
    %v585 = vld [vmem:[%s1 + $0x40] sm:$0xff]
    %v586 = vld [vmem:[%s1 + $0x48] sm:$0xff]
    %v587 = vld [vmem:[%s1 + $0x50] sm:$0xff]
    %v588 = vld [vmem:[%s1 + $0x58] sm:$0xff]
    %v589 = vld [vmem:[%s1 + $0x60] sm:$0xff]
    %v590 = vld [vmem:[%s1 + $0x68] sm:$0xff]
    %v591 = vld [vmem:[%s1 + $0x70] sm:$0xff]
    %v592 = vld [vmem:[%s1 + $0x78] sm:$0xff]
    %v593 = vld [vmem:[%s3] sm:$0x1]
    %v595 = vperm.slane %v593, 0
    %597 = vmatpush.msra.mxu0 %v592
    %598 = vmatpush.msra.mxu0 %v591
    %599 = vmatpush.msra.mxu0 %v590
    %600 = vmatpush.msra.mxu0 %v589
    %601 = vmatpush.msra.mxu0 %v588
    %602 = vmatpush.msra.mxu0 %v587
    %603 = vmatpush.msra.mxu0 %v586
    %604 = vmatpush.msra.mxu0 %v585
    %605 = vmatpush.msra.mxu0 %v584
    %606 = vmatpush.msra.mxu0 %v583
    %607 = vmatpush.msra.mxu0 %v582
    %608 = vmatpush.msra.mxu0 %v581
    %609 = vmatpush.msra.mxu0 %v580
    %610 = vmatpush.msra.mxu0 %v579
    %611 = vmatpush.msra.mxu0 %v578
    %612 = vmatpush.msra.mxu0 %v577
    %613 = vmatmul.f32.gmra.mxu0 %v575
    %v614 = vpop.f32.mrf.mxu0
    %v615 = vadd.f32 %v595, %v614
    %616 = vdwg.mxu0
    %v617 = vld [vmem:[%s120] sm:$0xff]
    %v618 = vld [vmem:[%s122] sm:$0xff]
    %v619 = vld [vmem:[%s122 + $0x8] sm:$0xff]
    %v620 = vld [vmem:[%s122 + $0x10] sm:$0xff]
    %v621 = vld [vmem:[%s122 + $0x18] sm:$0xff]
    %v622 = vld [vmem:[%s122 + $0x20] sm:$0xff]
    %v623 = vld [vmem:[%s122 + $0x28] sm:$0xff]
    %v624 = vld [vmem:[%s122 + $0x30] sm:$0xff]
    %v625 = vld [vmem:[%s122 + $0x38] sm:$0xff]
    %v626 = vld [vmem:[%s122 + $0x40] sm:$0xff]
    %v627 = vld [vmem:[%s122 + $0x48] sm:$0xff]
    %v628 = vld [vmem:[%s122 + $0x50] sm:$0xff]
    %v629 = vld [vmem:[%s122 + $0x58] sm:$0xff]
    %v630 = vld [vmem:[%s122 + $0x60] sm:$0xff]
    %v631 = vld [vmem:[%s122 + $0x68] sm:$0xff]
    %v632 = vld [vmem:[%s122 + $0x70] sm:$0xff]
    %v633 = vld [vmem:[%s122 + $0x78] sm:$0xff]
    %634 = vmatpush.msra.mxu0 %v633
    %635 = vmatpush.msra.mxu0 %v632
    %636 = vmatpush.msra.mxu0 %v631
    %637 = vmatpush.msra.mxu0 %v630
    %638 = vmatpush.msra.mxu0 %v629
    %639 = vmatpush.msra.mxu0 %v628
    %640 = vmatpush.msra.mxu0 %v627
    %641 = vmatpush.msra.mxu0 %v626
    %642 = vmatpush.msra.mxu0 %v625
    %643 = vmatpush.msra.mxu0 %v624
    %644 = vmatpush.msra.mxu0 %v623
    %645 = vmatpush.msra.mxu0 %v622
    %646 = vmatpush.msra.mxu0 %v621
    %647 = vmatpush.msra.mxu0 %v620
    %648 = vmatpush.msra.mxu0 %v619
    %649 = vmatpush.msra.mxu0 %v618
    %650 = vmatmul.f32.gmra.mxu0 %v617
    %v651 = vpop.f32.mrf.mxu0
    %v652 = vadd.f32 0.0, %v651
    %653 = vdwg.mxu0
    %v654 = vadd.f32 %v615, %v652
    %v655 = vtanh.pop %v654
    %656 = vst [vmem:[%s120] sm:$0xff] %v655
    %s657 = scalar_lea.vmem %s4, 32
    %658 = vst [vmem:[%s657] sm:$0xff] %v655
    %s659 = scalar_lea.vmem %s0, 40
    %v660 = vld [vmem:[%s659] sm:$0xff]
    %v661 = vld [vmem:[#allocation2] sm:$0xff]
    %v662 = vld [vmem:[#allocation3] sm:$0xff]
    %v663 = vld [vmem:[#allocation3 + $0x8] sm:$0xff]
    %v664 = vld [vmem:[#allocation3 + $0x10] sm:$0xff]
    %v665 = vld [vmem:[#allocation3 + $0x18] sm:$0xff]
    %v666 = vld [vmem:[#allocation3 + $0x20] sm:$0xff]
    %v667 = vld [vmem:[#allocation3 + $0x28] sm:$0xff]
    %v668 = vld [vmem:[#allocation3 + $0x30] sm:$0xff]
    %v669 = vld [vmem:[#allocation3 + $0x38] sm:$0xff]
    %v670 = vld [vmem:[#allocation3 + $0x40] sm:$0xff]
    %v671 = vld [vmem:[#allocation3 + $0x48] sm:$0xff]
    %v672 = vld [vmem:[#allocation3 + $0x50] sm:$0xff]
    %v673 = vld [vmem:[#allocation3 + $0x58] sm:$0xff]
    %v674 = vld [vmem:[#allocation3 + $0x60] sm:$0xff]
    %v675 = vld [vmem:[#allocation3 + $0x68] sm:$0xff]
    %v676 = vld [vmem:[#allocation3 + $0x70] sm:$0xff]
    %v677 = vld [vmem:[#allocation3 + $0x78] sm:$0xff]
    %678 = vmatpush.msra.mxu0 %v677
    %679 = vmatpush.msra.mxu0 %v676
    %680 = vmatpush.msra.mxu0 %v675
    %681 = vmatpush.msra.mxu0 %v674
    %682 = vmatpush.msra.mxu0 %v673
    %683 = vmatpush.msra.mxu0 %v672
    %684 = vmatpush.msra.mxu0 %v671
    %685 = vmatpush.msra.mxu0 %v670
    %686 = vmatpush.msra.mxu0 %v669
    %687 = vmatpush.msra.mxu0 %v668
    %688 = vmatpush.msra.mxu0 %v667
    %689 = vmatpush.msra.mxu0 %v666
    %690 = vmatpush.msra.mxu0 %v665
    %691 = vmatpush.msra.mxu0 %v664
    %692 = vmatpush.msra.mxu0 %v663
    %693 = vmatpush.msra.mxu0 %v662
    %694 = vmatmul.f32.gmra.mxu0 %v661
    %v695 = vpop.f32.mrf.mxu0
    %v696 = vadd.f32 0.0, %v695
    %697 = vdwg.mxu0
    %v698 = vadd.f32 %v660, %v696
    %v699 = vtanh.pop %v698
    %700 = vst [vmem:[#allocation2] sm:$0xff] %v699
    %v701 = vld [vmem:[%s1] sm:$0xff]
    %v702 = vld [vmem:[%s1 + $0x8] sm:$0xff]
    %v703 = vld [vmem:[%s1 + $0x10] sm:$0xff]
    %v704 = vld [vmem:[%s1 + $0x18] sm:$0xff]
    %v705 = vld [vmem:[%s1 + $0x20] sm:$0xff]
    %v706 = vld [vmem:[%s1 + $0x28] sm:$0xff]
    %v707 = vld [vmem:[%s1 + $0x30] sm:$0xff]
    %v708 = vld [vmem:[%s1 + $0x38] sm:$0xff]
    %v709 = vld [vmem:[%s1 + $0x40] sm:$0xff]
    %v710 = vld [vmem:[%s1 + $0x48] sm:$0xff]
    %v711 = vld [vmem:[%s1 + $0x50] sm:$0xff]
    %v712 = vld [vmem:[%s1 + $0x58] sm:$0xff]
    %v713 = vld [vmem:[%s1 + $0x60] sm:$0xff]
    %v714 = vld [vmem:[%s1 + $0x68] sm:$0xff]
    %v715 = vld [vmem:[%s1 + $0x70] sm:$0xff]
    %v716 = vld [vmem:[%s1 + $0x78] sm:$0xff]
    %v717 = vld [vmem:[%s3] sm:$0x1]
    %v719 = vperm.slane %v717, 0
    %721 = vmatpush.msra.mxu0 %v716
    %722 = vmatpush.msra.mxu0 %v715
    %723 = vmatpush.msra.mxu0 %v714
    %724 = vmatpush.msra.mxu0 %v713
    %725 = vmatpush.msra.mxu0 %v712
    %726 = vmatpush.msra.mxu0 %v711
    %727 = vmatpush.msra.mxu0 %v710
    %728 = vmatpush.msra.mxu0 %v709
    %729 = vmatpush.msra.mxu0 %v708
    %730 = vmatpush.msra.mxu0 %v707
    %731 = vmatpush.msra.mxu0 %v706
    %732 = vmatpush.msra.mxu0 %v705
    %733 = vmatpush.msra.mxu0 %v704
    %734 = vmatpush.msra.mxu0 %v703
    %735 = vmatpush.msra.mxu0 %v702
    %736 = vmatpush.msra.mxu0 %v701
    %737 = vmatmul.f32.gmra.mxu0 %v699
    %v738 = vpop.f32.mrf.mxu0
    %v739 = vadd.f32 %v719, %v738
    %740 = vdwg.mxu0
    %v741 = vld [vmem:[%s120] sm:$0xff]
    %v742 = vld [vmem:[%s122] sm:$0xff]
    %v743 = vld [vmem:[%s122 + $0x8] sm:$0xff]
    %v744 = vld [vmem:[%s122 + $0x10] sm:$0xff]
    %v745 = vld [vmem:[%s122 + $0x18] sm:$0xff]
    %v746 = vld [vmem:[%s122 + $0x20] sm:$0xff]
    %v747 = vld [vmem:[%s122 + $0x28] sm:$0xff]
    %v748 = vld [vmem:[%s122 + $0x30] sm:$0xff]
    %v749 = vld [vmem:[%s122 + $0x38] sm:$0xff]
    %v750 = vld [vmem:[%s122 + $0x40] sm:$0xff]
    %v751 = vld [vmem:[%s122 + $0x48] sm:$0xff]
    %v752 = vld [vmem:[%s122 + $0x50] sm:$0xff]
    %v753 = vld [vmem:[%s122 + $0x58] sm:$0xff]
    %v754 = vld [vmem:[%s122 + $0x60] sm:$0xff]
    %v755 = vld [vmem:[%s122 + $0x68] sm:$0xff]
    %v756 = vld [vmem:[%s122 + $0x70] sm:$0xff]
    %v757 = vld [vmem:[%s122 + $0x78] sm:$0xff]
    %758 = vmatpush.msra.mxu0 %v757
    %759 = vmatpush.msra.mxu0 %v756
    %760 = vmatpush.msra.mxu0 %v755
    %761 = vmatpush.msra.mxu0 %v754
    %762 = vmatpush.msra.mxu0 %v753
    %763 = vmatpush.msra.mxu0 %v752
    %764 = vmatpush.msra.mxu0 %v751
    %765 = vmatpush.msra.mxu0 %v750
    %766 = vmatpush.msra.mxu0 %v749
    %767 = vmatpush.msra.mxu0 %v748
    %768 = vmatpush.msra.mxu0 %v747
    %769 = vmatpush.msra.mxu0 %v746
    %770 = vmatpush.msra.mxu0 %v745
    %771 = vmatpush.msra.mxu0 %v744
    %772 = vmatpush.msra.mxu0 %v743
    %773 = vmatpush.msra.mxu0 %v742
    %774 = vmatmul.f32.gmra.mxu0 %v741
    %v775 = vpop.f32.mrf.mxu0
    %v776 = vadd.f32 0.0, %v775
    %777 = vdwg.mxu0
    %v778 = vadd.f32 %v739, %v776
    %v779 = vtanh.pop %v778
    %780 = vst [vmem:[%s120] sm:$0xff] %v779
    %s781 = scalar_lea.vmem %s4, 40
    %782 = vst [vmem:[%s781] sm:$0xff] %v779
    %s783 = scalar_lea.vmem %s0, 48
    %v784 = vld [vmem:[%s783] sm:$0xff]
    %v785 = vld [vmem:[#allocation2] sm:$0xff]
    %v786 = vld [vmem:[#allocation3] sm:$0xff]
    %v787 = vld [vmem:[#allocation3 + $0x8] sm:$0xff]
    %v788 = vld [vmem:[#allocation3 + $0x10] sm:$0xff]
    %v789 = vld [vmem:[#allocation3 + $0x18] sm:$0xff]
    %v790 = vld [vmem:[#allocation3 + $0x20] sm:$0xff]
    %v791 = vld [vmem:[#allocation3 + $0x28] sm:$0xff]
    %v792 = vld [vmem:[#allocation3 + $0x30] sm:$0xff]
    %v793 = vld [vmem:[#allocation3 + $0x38] sm:$0xff]
    %v794 = vld [vmem:[#allocation3 + $0x40] sm:$0xff]
    %v795 = vld [vmem:[#allocation3 + $0x48] sm:$0xff]
    %v796 = vld [vmem:[#allocation3 + $0x50] sm:$0xff]
    %v797 = vld [vmem:[#allocation3 + $0x58] sm:$0xff]
    %v798 = vld [vmem:[#allocation3 + $0x60] sm:$0xff]
    %v799 = vld [vmem:[#allocation3 + $0x68] sm:$0xff]
    %v800 = vld [vmem:[#allocation3 + $0x70] sm:$0xff]
    %v801 = vld [vmem:[#allocation3 + $0x78] sm:$0xff]
    %802 = vmatpush.msra.mxu0 %v801
    %803 = vmatpush.msra.mxu0 %v800
    %804 = vmatpush.msra.mxu0 %v799
    %805 = vmatpush.msra.mxu0 %v798
    %806 = vmatpush.msra.mxu0 %v797
    %807 = vmatpush.msra.mxu0 %v796
    %808 = vmatpush.msra.mxu0 %v795
    %809 = vmatpush.msra.mxu0 %v794
    %810 = vmatpush.msra.mxu0 %v793
    %811 = vmatpush.msra.mxu0 %v792
    %812 = vmatpush.msra.mxu0 %v791
    %813 = vmatpush.msra.mxu0 %v790
    %814 = vmatpush.msra.mxu0 %v789
    %815 = vmatpush.msra.mxu0 %v788
    %816 = vmatpush.msra.mxu0 %v787
    %817 = vmatpush.msra.mxu0 %v786
    %818 = vmatmul.f32.gmra.mxu0 %v785
    %v819 = vpop.f32.mrf.mxu0
    %v820 = vadd.f32 0.0, %v819
    %821 = vdwg.mxu0
    %v822 = vadd.f32 %v784, %v820
    %v823 = vtanh.pop %v822
    %824 = vst [vmem:[#allocation2] sm:$0xff] %v823
    %v825 = vld [vmem:[%s1] sm:$0xff]
    %v826 = vld [vmem:[%s1 + $0x8] sm:$0xff]
    %v827 = vld [vmem:[%s1 + $0x10] sm:$0xff]
    %v828 = vld [vmem:[%s1 + $0x18] sm:$0xff]
    %v829 = vld [vmem:[%s1 + $0x20] sm:$0xff]
    %v830 = vld [vmem:[%s1 + $0x28] sm:$0xff]
    %v831 = vld [vmem:[%s1 + $0x30] sm:$0xff]
    %v832 = vld [vmem:[%s1 + $0x38] sm:$0xff]
    %v833 = vld [vmem:[%s1 + $0x40] sm:$0xff]
    %v834 = vld [vmem:[%s1 + $0x48] sm:$0xff]
    %v835 = vld [vmem:[%s1 + $0x50] sm:$0xff]
    %v836 = vld [vmem:[%s1 + $0x58] sm:$0xff]
    %v837 = vld [vmem:[%s1 + $0x60] sm:$0xff]
    %v838 = vld [vmem:[%s1 + $0x68] sm:$0xff]
    %v839 = vld [vmem:[%s1 + $0x70] sm:$0xff]
    %v840 = vld [vmem:[%s1 + $0x78] sm:$0xff]
    %v841 = vld [vmem:[%s3] sm:$0x1]
    %v843 = vperm.slane %v841, 0
    %845 = vmatpush.msra.mxu0 %v840
    %846 = vmatpush.msra.mxu0 %v839
    %847 = vmatpush.msra.mxu0 %v838
    %848 = vmatpush.msra.mxu0 %v837
    %849 = vmatpush.msra.mxu0 %v836
    %850 = vmatpush.msra.mxu0 %v835
    %851 = vmatpush.msra.mxu0 %v834
    %852 = vmatpush.msra.mxu0 %v833
    %853 = vmatpush.msra.mxu0 %v832
    %854 = vmatpush.msra.mxu0 %v831
    %855 = vmatpush.msra.mxu0 %v830
    %856 = vmatpush.msra.mxu0 %v829
    %857 = vmatpush.msra.mxu0 %v828
    %858 = vmatpush.msra.mxu0 %v827
    %859 = vmatpush.msra.mxu0 %v826
    %860 = vmatpush.msra.mxu0 %v825
    %861 = vmatmul.f32.gmra.mxu0 %v823
    %v862 = vpop.f32.mrf.mxu0
    %v863 = vadd.f32 %v843, %v862
    %864 = vdwg.mxu0
    %v865 = vld [vmem:[%s120] sm:$0xff]
    %v866 = vld [vmem:[%s122] sm:$0xff]
    %v867 = vld [vmem:[%s122 + $0x8] sm:$0xff]
    %v868 = vld [vmem:[%s122 + $0x10] sm:$0xff]
    %v869 = vld [vmem:[%s122 + $0x18] sm:$0xff]
    %v870 = vld [vmem:[%s122 + $0x20] sm:$0xff]
    %v871 = vld [vmem:[%s122 + $0x28] sm:$0xff]
    %v872 = vld [vmem:[%s122 + $0x30] sm:$0xff]
    %v873 = vld [vmem:[%s122 + $0x38] sm:$0xff]
    %v874 = vld [vmem:[%s122 + $0x40] sm:$0xff]
    %v875 = vld [vmem:[%s122 + $0x48] sm:$0xff]
    %v876 = vld [vmem:[%s122 + $0x50] sm:$0xff]
    %v877 = vld [vmem:[%s122 + $0x58] sm:$0xff]
    %v878 = vld [vmem:[%s122 + $0x60] sm:$0xff]
    %v879 = vld [vmem:[%s122 + $0x68] sm:$0xff]
    %v880 = vld [vmem:[%s122 + $0x70] sm:$0xff]
    %v881 = vld [vmem:[%s122 + $0x78] sm:$0xff]
    %882 = vmatpush.msra.mxu0 %v881
    %883 = vmatpush.msra.mxu0 %v880
    %884 = vmatpush.msra.mxu0 %v879
    %885 = vmatpush.msra.mxu0 %v878
    %886 = vmatpush.msra.mxu0 %v877
    %887 = vmatpush.msra.mxu0 %v876
    %888 = vmatpush.msra.mxu0 %v875
    %889 = vmatpush.msra.mxu0 %v874
    %890 = vmatpush.msra.mxu0 %v873
    %891 = vmatpush.msra.mxu0 %v872
    %892 = vmatpush.msra.mxu0 %v871
    %893 = vmatpush.msra.mxu0 %v870
    %894 = vmatpush.msra.mxu0 %v869
    %895 = vmatpush.msra.mxu0 %v868
    %896 = vmatpush.msra.mxu0 %v867
    %897 = vmatpush.msra.mxu0 %v866
    %898 = vmatmul.f32.gmra.mxu0 %v865
    %v899 = vpop.f32.mrf.mxu0
    %v900 = vadd.f32 0.0, %v899
    %901 = vdwg.mxu0
    %v902 = vadd.f32 %v863, %v900
    %v903 = vtanh.pop %v902
    %904 = vst [vmem:[%s120] sm:$0xff] %v903
    %s905 = scalar_lea.vmem %s4, 48
    %906 = vst [vmem:[%s905] sm:$0xff] %v903
    %s907 = scalar_lea.vmem %s0, 56
    %v908 = vld [vmem:[%s907] sm:$0xff]
    %v909 = vld [vmem:[#allocation2] sm:$0xff]
    %v910 = vld [vmem:[#allocation3] sm:$0xff]
    %v911 = vld [vmem:[#allocation3 + $0x8] sm:$0xff]
    %v912 = vld [vmem:[#allocation3 + $0x10] sm:$0xff]
    %v913 = vld [vmem:[#allocation3 + $0x18] sm:$0xff]
    %v914 = vld [vmem:[#allocation3 + $0x20] sm:$0xff]
    %v915 = vld [vmem:[#allocation3 + $0x28] sm:$0xff]
    %v916 = vld [vmem:[#allocation3 + $0x30] sm:$0xff]
    %v917 = vld [vmem:[#allocation3 + $0x38] sm:$0xff]
    %v918 = vld [vmem:[#allocation3 + $0x40] sm:$0xff]
    %v919 = vld [vmem:[#allocation3 + $0x48] sm:$0xff]
    %v920 = vld [vmem:[#allocation3 + $0x50] sm:$0xff]
    %v921 = vld [vmem:[#allocation3 + $0x58] sm:$0xff]
    %v922 = vld [vmem:[#allocation3 + $0x60] sm:$0xff]
    %v923 = vld [vmem:[#allocation3 + $0x68] sm:$0xff]
    %v924 = vld [vmem:[#allocation3 + $0x70] sm:$0xff]
    %v925 = vld [vmem:[#allocation3 + $0x78] sm:$0xff]
    %926 = vmatpush.msra.mxu0 %v925
    %927 = vmatpush.msra.mxu0 %v924
    %928 = vmatpush.msra.mxu0 %v923
    %929 = vmatpush.msra.mxu0 %v922
    %930 = vmatpush.msra.mxu0 %v921
    %931 = vmatpush.msra.mxu0 %v920
    %932 = vmatpush.msra.mxu0 %v919
    %933 = vmatpush.msra.mxu0 %v918
    %934 = vmatpush.msra.mxu0 %v917
    %935 = vmatpush.msra.mxu0 %v916
    %936 = vmatpush.msra.mxu0 %v915
    %937 = vmatpush.msra.mxu0 %v914
    %938 = vmatpush.msra.mxu0 %v913
    %939 = vmatpush.msra.mxu0 %v912
    %940 = vmatpush.msra.mxu0 %v911
    %941 = vmatpush.msra.mxu0 %v910
    %942 = vmatmul.f32.gmra.mxu0 %v909
    %v943 = vpop.f32.mrf.mxu0
    %v944 = vadd.f32 0.0, %v943
    %945 = vdwg.mxu0
    %v946 = vadd.f32 %v908, %v944
    %v947 = vtanh.pop %v946
    %948 = vst [vmem:[#allocation2] sm:$0xff] %v947
    %v949 = vld [vmem:[%s1] sm:$0xff]
    %v950 = vld [vmem:[%s1 + $0x8] sm:$0xff]
    %v951 = vld [vmem:[%s1 + $0x10] sm:$0xff]
    %v952 = vld [vmem:[%s1 + $0x18] sm:$0xff]
    %v953 = vld [vmem:[%s1 + $0x20] sm:$0xff]
    %v954 = vld [vmem:[%s1 + $0x28] sm:$0xff]
    %v955 = vld [vmem:[%s1 + $0x30] sm:$0xff]
    %v956 = vld [vmem:[%s1 + $0x38] sm:$0xff]
    %v957 = vld [vmem:[%s1 + $0x40] sm:$0xff]
    %v958 = vld [vmem:[%s1 + $0x48] sm:$0xff]
    %v959 = vld [vmem:[%s1 + $0x50] sm:$0xff]
    %v960 = vld [vmem:[%s1 + $0x58] sm:$0xff]
    %v961 = vld [vmem:[%s1 + $0x60] sm:$0xff]
    %v962 = vld [vmem:[%s1 + $0x68] sm:$0xff]
    %v963 = vld [vmem:[%s1 + $0x70] sm:$0xff]
    %v964 = vld [vmem:[%s1 + $0x78] sm:$0xff]
    %v965 = vld [vmem:[%s3] sm:$0x1]
    %v967 = vperm.slane %v965, 0
    %969 = vmatpush.msra.mxu0 %v964
    %970 = vmatpush.msra.mxu0 %v963
    %971 = vmatpush.msra.mxu0 %v962
    %972 = vmatpush.msra.mxu0 %v961
    %973 = vmatpush.msra.mxu0 %v960
    %974 = vmatpush.msra.mxu0 %v959
    %975 = vmatpush.msra.mxu0 %v958
    %976 = vmatpush.msra.mxu0 %v957
    %977 = vmatpush.msra.mxu0 %v956
    %978 = vmatpush.msra.mxu0 %v955
    %979 = vmatpush.msra.mxu0 %v954
    %980 = vmatpush.msra.mxu0 %v953
    %981 = vmatpush.msra.mxu0 %v952
    %982 = vmatpush.msra.mxu0 %v951
    %983 = vmatpush.msra.mxu0 %v950
    %984 = vmatpush.msra.mxu0 %v949
    %985 = vmatmul.f32.gmra.mxu0 %v947
    %v986 = vpop.f32.mrf.mxu0
    %v987 = vadd.f32 %v967, %v986
    %988 = vdwg.mxu0
    %v989 = vld [vmem:[%s120] sm:$0xff]
    %v990 = vld [vmem:[%s122] sm:$0xff]
    %v991 = vld [vmem:[%s122 + $0x8] sm:$0xff]
    %v992 = vld [vmem:[%s122 + $0x10] sm:$0xff]
    %v993 = vld [vmem:[%s122 + $0x18] sm:$0xff]
    %v994 = vld [vmem:[%s122 + $0x20] sm:$0xff]
    %v995 = vld [vmem:[%s122 + $0x28] sm:$0xff]
    %v996 = vld [vmem:[%s122 + $0x30] sm:$0xff]
    %v997 = vld [vmem:[%s122 + $0x38] sm:$0xff]
    %v998 = vld [vmem:[%s122 + $0x40] sm:$0xff]
    %v999 = vld [vmem:[%s122 + $0x48] sm:$0xff]
    %v1000 = vld [vmem:[%s122 + $0x50] sm:$0xff]
    %v1001 = vld [vmem:[%s122 + $0x58] sm:$0xff]
    %v1002 = vld [vmem:[%s122 + $0x60] sm:$0xff]
    %v1003 = vld [vmem:[%s122 + $0x68] sm:$0xff]
    %v1004 = vld [vmem:[%s122 + $0x70] sm:$0xff]
    %v1005 = vld [vmem:[%s122 + $0x78] sm:$0xff]
    %1006 = vmatpush.msra.mxu0 %v1005
    %1007 = vmatpush.msra.mxu0 %v1004
    %1008 = vmatpush.msra.mxu0 %v1003
    %1009 = vmatpush.msra.mxu0 %v1002
    %1010 = vmatpush.msra.mxu0 %v1001
    %1011 = vmatpush.msra.mxu0 %v1000
    %1012 = vmatpush.msra.mxu0 %v999
    %1013 = vmatpush.msra.mxu0 %v998
    %1014 = vmatpush.msra.mxu0 %v997
    %1015 = vmatpush.msra.mxu0 %v996
    %1016 = vmatpush.msra.mxu0 %v995
    %1017 = vmatpush.msra.mxu0 %v994
    %1018 = vmatpush.msra.mxu0 %v993
    %1019 = vmatpush.msra.mxu0 %v992
    %1020 = vmatpush.msra.mxu0 %v991
    %1021 = vmatpush.msra.mxu0 %v990
    %1022 = vmatmul.f32.gmra.mxu0 %v989
    %v1023 = vpop.f32.mrf.mxu0
    %v1024 = vadd.f32 0.0, %v1023
    %1025 = vdwg.mxu0
    %v1026 = vadd.f32 %v987, %v1024
    %v1027 = vtanh.pop %v1026
    %1028 = vst [vmem:[%s120] sm:$0xff] %v1027
    %s1029 = scalar_lea.vmem %s4, 56
    %1030 = vst [vmem:[%s1029] sm:$0xff] %v1027
    // Predicated region
    $region26: #{rnn_forward.1} parent=1 // pred_check
      _
    $region27: #{rnn_forward.1} parent=1 // pred_check_branch
      %1032 = sbr.rel (0) target = $region29
    $region28: #{rnn_forward.1} parent=1 // pred_region
      _
    $region29: #{rnn_forward.1} parent=1 // pred_fallthru
      _
    // Predicated region
    $region30: #{rnn_forward.1} parent=1 // pred_check
      _
    $region31: #{rnn_forward.1} parent=1 // pred_check_branch
      %1034 = sbr.rel (0) target = $region33
    $region32: #{rnn_forward.1} parent=1 // pred_region
      _
    $region33: #{rnn_forward.1} parent=1 // pred_fallthru
      _
    %1035 = vsyncpa [#allocation4], 1

</llo_original>
